<compile_context>
chip_gen: v5e
topology: v5e:2x2
jax: 0.10.0
libtpu: 0.0.40
codegen_flags: <defaults>
</compile_context>

<pallas_src>
import functools

import jax
import jax.numpy as jnp
from jax.experimental import pallas as pl
from jax.experimental.pallas import tpu as pltpu


def _round_up(x, m):
    return ((x + m - 1) // m) * m


def _cdiv(a, b):
    return (a + b - 1) // b


def _vmem_capacity_bytes(default=64 * 1024 * 1024):
    """Physical VMEM per core. Heuristic query only (tile sizing)."""
    try:
        return int(pltpu.get_tpu_info().vmem_capacity_bytes)
    except Exception:  # heuristics fall back to the v7x-safe 64 MiB default
        return default


# ------------------------------- kernels -------------------------------------


def _epilogue(feats_f32, wexp_ref, wcls_ref, out_ref):
    """L2-normalize (f32 VPU/EUP) -> Linear+ReLU -> Linear (bf16 MXU, f32 acc)."""
    sq = jnp.sum(feats_f32 * feats_f32, axis=-1, keepdims=True)
    feats = feats_f32 * jax.lax.rsqrt(sq + 1e-12)
    hidden = jnp.dot(feats.astype(wexp_ref.dtype), wexp_ref[...],
                     preferred_element_type=jnp.float32)
    hidden = jnp.maximum(hidden, 0.0)
    out_ref[...] = jnp.dot(hidden.astype(wcls_ref.dtype), wcls_ref[...],
                           preferred_element_type=jnp.float32
                           ).astype(out_ref.dtype)


def _kernel_single_k(x_ref, wenc_ref, wexp_ref, wcls_ref, out_ref):
    """Small-D fast path: one encoder matmul, no scratch, no predication."""
    feats = jnp.dot(x_ref[...].astype(wenc_ref.dtype), wenc_ref[...],
                    preferred_element_type=jnp.float32)
    _epilogue(feats, wexp_ref, wcls_ref, out_ref)


def _kernel_k_tiled(x_ref, wenc_ref, wexp_ref, wcls_ref, out_ref, acc_ref,
                    *, k_axis):
    """K-tiled encoder matmul with f32 VMEM accumulator; epilogue on last K."""
    k = pl.program_id(k_axis)

    @pl.when(k == 0)
    def _():
        acc_ref[...] = jnp.zeros_like(acc_ref)

    # x arrives as f32 straight from HBM (tails zero-padded); cast to bf16 on
    # the VPU just before the MXU dot -- hides under DMA/MXU, halves x traffic.
    acc_ref[...] += jnp.dot(x_ref[...].astype(wenc_ref.dtype), wenc_ref[...],
                            preferred_element_type=jnp.float32)

    @pl.when(k == pl.num_programs(k_axis) - 1)
    def _():
        _epilogue(acc_ref[...], wexp_ref, wcls_ref, out_ref)


# ---------------------------- host-side wrapper -------------------------------


def prepare_adaptor_params(w_enc, w_exp, w_cls, *, max_tk=None,
                           weight_dtype=jnp.bfloat16):
    """Pad & cast the frozen weights ONCE (hoisted out of the per-call path).

    w_enc : [D, F]  frozen synthetic encoder projection (F = 512)
    w_exp : [F, H]  expansion_layer weight, stored [in, out]
    w_cls : [H, C]  analytic_adaptor weight, stored [in, out]
    """
    # TODO(synk): on v7x the streamed w_enc could be quantised to fp8
    # (bf16 x fp8 MXU) to halve its HBM stream; needs a one-off accuracy
    # calibration, so it is kept in bf16 here.
    D, F = w_enc.shape
    H = w_exp.shape[1]
    C = w_cls.shape[1]
    assert w_exp.shape[0] == F and w_cls.shape[0] == H

    Fp = _round_up(F, 128)
    Hp = _round_up(H, 128)
    Cp = _round_up(C, 128)            # lane-dense output stores (no vst.msk)

    # K-tile of the encoder matmul: cdiv-based so per-chunk padding stays
    # < 128 columns; generation-aware target (v5e/v6e: 128 MiB VMEM -> 4096).
    if max_tk is not None:
        target = max(128, _round_up(max_tk, 128))
    elif D <= 4096:
        target = _round_up(D, 128)
    else:
        target = 4096 if _vmem_capacity_bytes() >= 96 * 1024 * 1024 else 2048
    if target >= D:
        tk = _round_up(D, 128)
    else:
        tk = _round_up(_cdiv(D, _cdiv(D, target)), 128)
    Dp = _round_up(D, tk)

    wenc_p = jnp.zeros((Dp, Fp), weight_dtype).at[:D, :F].set(
        w_enc.astype(weight_dtype))
    wexp_p = jnp.zeros((Fp, Hp), weight_dtype).at[:F, :H].set(
        w_exp.astype(weight_dtype))
    wcls_p = jnp.zeros((Hp, Cp), weight_dtype).at[:H, :C].set(
        w_cls.astype(weight_dtype))

    meta = dict(D=D, F=F, H=H, C=C, Dp=Dp, Fp=Fp, Hp=Hp, Cp=Cp,
                tk=tk, k_steps=Dp // tk)
    return (wenc_p, wexp_p, wcls_p), meta


def continual_clip_adaptor_forward(x_flat, params, meta, *, tb=None,
                                   single_pass=None, vmem_limit_bytes=None):
    """
    x_flat : [B, D] f32 flattened images.
    params : padded bf16 weights from prepare_adaptor_params (prepared once).
    Returns [B, C] f32 logits.
    """
    wenc_p, wexp_p, wcls_p = params
    D, C = meta["D"], meta["C"]
    Dp, Fp, Hp, Cp = meta["Dp"], meta["Fp"], meta["Hp"], meta["Cp"]
    tk, k_steps = meta["tk"], meta["k_steps"]

    B = x_flat.shape[0]
    assert x_flat.shape[1] == D

    vmem_cap = _vmem_capacity_bytes()
    if vmem_limit_bytes is None:
        vmem_limit_bytes = min(vmem_cap // 2, 64 * 1024 * 1024)
    budget = int(0.85 * vmem_limit_bytes)

    # ---- batch tile heuristic: reuse on the w_enc stream is ~tb flop/byte ----
    if tb is None:
        if B >= 1024:
            tb = 512
        elif B >= 512:
            tb = 256
        elif B >= 256:
            tb = 128
        elif B >= 32:
            tb = _round_up(_cdiv(B, 2), 16)   # >=2 tiles -> both v7x TCs busy
        else:
            tb = _round_up(max(B, 8), 16)     # single padded tile
    tb = max(16, _round_up(tb, 16))

    # ---- VMEM usage estimates (f32 x blocks, bf16 weights, f32 out) ---------
    def tiled_vmem(tb_, tk_, with_acc):
        u = (2 * tb_ * tk_ * 4 + 2 * tk_ * Fp * 2
             + 2 * Fp * Hp * 2 + 2 * Hp * Cp * 2 + 2 * tb_ * Cp * 4)
        if with_acc:
            u += tb_ * Fp * 4
        return u

    Bp_sp = _round_up(B, 16)
    sp_vmem = (2 * Bp_sp * tk * 4 + 2 * tk * Fp * 2
               + 2 * Fp * Hp * 2 + 2 * Hp * Cp * 2
               + 2 * Bp_sp * Cp * 4 + Bp_sp * Fp * 4)

    # ---- variant selection ---------------------------------------------------
    if k_steps == 1:
        variant = "single_k"              # small D: 1-D batch grid, no scratch
    elif single_pass is True or (single_pass is None and sp_vmem <= budget):
        variant = "single_pass"           # w_enc streamed exactly once
    else:
        variant = "batch_k"               # batch x K grid (large batches)

    if variant == "single_pass":
        Bp = Bp_sp
        use = sp_vmem
    else:
        tk_eff = Dp if variant == "single_k" else tk
        with_acc = variant == "batch_k"
        while tiled_vmem(tb, tk_eff, with_acc) > budget and tb > 16:
            tb = max(16, _round_up(tb // 2, 16))
        Bp = _round_up(B, tb)
        use = tiled_vmem(tb, tk_eff, with_acc)
    vmem_limit_bytes = int(max(vmem_limit_bytes,
                               min(vmem_cap, use + (4 << 20))))

    # ---- pad only the tails of x, in f32 (no bf16 HBM copy of x) -------------
    # Zero padding keeps the D-tail columns harmless (0 * w = 0, no NaN leak).
    xb = x_flat.astype(jnp.float32)
    if Bp != B or Dp != D:
        xb = jnp.pad(xb, ((0, Bp - B), (0, Dp - D)))

    n_btiles = 1 if variant == "single_pass" else Bp // tb
    cost = pl.CostEstimate(
        flops=int(2 * Bp * (Dp * Fp + Fp * Hp + Hp * Cp)),
        transcendentals=int(Bp),
        bytes_accessed=int(Bp * Dp * 4 + n_btiles * Dp * Fp * 2
                           + Fp * Hp * 2 + Hp * Cp * 2 + Bp * Cp * 4),
    )

    if variant == "single_k":
        kernel = _kernel_single_k
        grid = (Bp // tb,)
        in_specs = [
            pl.BlockSpec((tb, Dp), lambda i: (i, 0)),    # image rows (f32)
            pl.BlockSpec((Dp, Fp), lambda i: (0, 0)),    # encoder W (resident)
            pl.BlockSpec((Fp, Hp), lambda i: (0, 0)),    # expansion W
            pl.BlockSpec((Hp, Cp), lambda i: (0, 0)),    # adaptor W
        ]
        out_specs = pl.BlockSpec((tb, Cp), lambda i: (i, 0))
        scratch = []
        dims = ("parallel",)
    elif variant == "single_pass":
        kernel = functools.partial(_kernel_k_tiled, k_axis=0)
        grid = (k_steps,)
        in_specs = [
            pl.BlockSpec((Bp, tk), lambda k: (0, k)),    # full batch, K chunk
            pl.BlockSpec((tk, Fp), lambda k: (k, 0)),    # encoder chunk (once!)
            pl.BlockSpec((Fp, Hp), lambda k: (0, 0)),
            pl.BlockSpec((Hp, Cp), lambda k: (0, 0)),
        ]
        out_specs = pl.BlockSpec((Bp, Cp), lambda k: (0, 0))
        scratch = [pltpu.VMEM((Bp, Fp), jnp.float32)]    # resident full-batch acc
        dims = ("arbitrary",)
    else:  # "batch_k"
        kernel = functools.partial(_kernel_k_tiled, k_axis=1)
        grid = (Bp // tb, k_steps)
        in_specs = [
            pl.BlockSpec((tb, tk), lambda i, k: (i, k)),
            pl.BlockSpec((tk, Fp), lambda i, k: (k, 0)),
            pl.BlockSpec((Fp, Hp), lambda i, k: (0, 0)),
            pl.BlockSpec((Hp, Cp), lambda i, k: (0, 0)),
        ]
        out_specs = pl.BlockSpec((tb, Cp), lambda i, k: (i, 0))
        scratch = [pltpu.VMEM((tb, Fp), jnp.float32)]
        dims = ("parallel", "arbitrary")

    out_p = pl.pallas_call(
        kernel,
        out_shape=jax.ShapeDtypeStruct((Bp, Cp), jnp.float32),
        grid_spec=pltpu.PrefetchScalarGridSpec(
            num_scalar_prefetch=0,
            grid=grid,
            in_specs=in_specs,
            out_specs=out_specs,
            scratch_shapes=scratch,
        ),
        compiler_params=pltpu.CompilerParams(
            dimension_semantics=dims,
            vmem_limit_bytes=vmem_limit_bytes,
        ),
        cost_estimate=cost,
    )(xb, wenc_p, wexp_p, wcls_p)

    return out_p[:B, :C]


# ------------------------------- references ----------------------------------


def _reference_bf16(x, w_enc, w_exp, w_cls):
    """Pure-JAX reference using the kernel's bf16-operand / f32-accumulate recipe."""
    bf = jnp.bfloat16
    feats = jnp.dot(x.astype(bf), w_enc.astype(bf),
                    preferred_element_type=jnp.float32)
    feats = feats * jax.lax.rsqrt(
        jnp.sum(feats * feats, axis=-1, keepdims=True) + 1e-12)
    hidden = jnp.maximum(
        jnp.dot(feats.astype(bf), w_exp.astype(bf),
                preferred_element_type=jnp.float32), 0.0)
    return jnp.dot(hidden.astype(bf), w_cls.astype(bf),
                   preferred_element_type=jnp.float32)


def _reference_f32(x, w_enc, w_exp, w_cls):
    """True-f32 reference (PyTorch semantics) for a loose accuracy check."""
    hi = jax.lax.Precision.HIGHEST
    feats = jnp.dot(x, w_enc, precision=hi)
    feats = feats / jnp.linalg.norm(feats, axis=-1, keepdims=True)
    hidden = jnp.maximum(jnp.dot(feats, w_exp, precision=hi), 0.0)
    return jnp.dot(hidden, w_cls, precision=hi)


if __name__ == "__main__":
    # Small, module-consistent shapes:
    #   images: [B=8, C=3, H=16, W=16] (NCHW) -> flattened D_img = 768
    #   feature_dim = 512 (fixed by the module), cfg.hidden_dim = 256,
    #   cfg.current_class_num = 100 (not a multiple of 128 -> lane padding),
    #   feature_expansion = True.
    B, Cc, Hh, Ww = 8, 3, 16, 16
    D_img = Cc * Hh * Ww          # 768
    FEAT, HID, NCLS = 512, 256, 100

    key = jax.random.PRNGKey(0)
    k_img, k_enc, k_exp, k_cls = jax.random.split(key, 4)

    images = jax.random.normal(k_img, (B, Cc, Hh, Ww), dtype=jnp.float32)  # NCHW
    x_flat = images.reshape(B, D_img)

    # Deterministic synthetic frozen parameters (stored as [in, out]).
    w_enc = jax.random.normal(k_enc, (D_img, FEAT), dtype=jnp.float32) * 0.02
    w_exp = jax.random.normal(k_exp, (FEAT, HID), dtype=jnp.float32) * 0.05
    w_cls = jax.random.normal(k_cls, (HID, NCLS), dtype=jnp.float32) * 0.05

    ref_bf16 = _reference_bf16(x_flat, w_enc, w_exp, w_cls)
    ref_f32 = _reference_f32(x_flat, w_enc, w_exp, w_cls)

    # Path 1: default small-D fast path (1-D batch grid, no K tiling).
    params, meta = prepare_adaptor_params(w_enc, w_exp, w_cls)   # prepared ONCE
    out = jax.block_until_ready(
        continual_clip_adaptor_forward(x_flat, params, meta))
    assert out.shape == (B, NCLS)
    assert jnp.allclose(out, ref_bf16, atol=2e-3, rtol=2e-2), "mismatch (bf16 ref)"
    assert jnp.allclose(out, ref_f32, atol=5e-3, rtol=5e-2), "mismatch (f32 ref)"

    # Path 2: K-tiled encoder, w_enc streamed exactly once (full-batch VMEM acc).
    params_kt, meta_kt = prepare_adaptor_params(w_enc, w_exp, w_cls, max_tk=256)
    out2 = jax.block_until_ready(
        continual_clip_adaptor_forward(x_flat, params_kt, meta_kt,
                                       single_pass=True))
    assert jnp.allclose(out2, ref_bf16, atol=2e-3, rtol=2e-2), "mismatch (single_pass)"

    # Path 3: batch x K tiled path (shape of the large-batch configuration).
    out3 = jax.block_until_ready(
        continual_clip_adaptor_forward(x_flat, params_kt, meta_kt,
                                       single_pass=False))
    assert jnp.allclose(out3, ref_bf16, atol=2e-3, rtol=2e-2), "mismatch (batch_k)"

    print("KERNEL_OK")
</pallas_src>

<mosaic_0001>
module attributes {stable_mosaic.version = 11 : i64} {
  func.func @_kernel_single_k(%arg0: i32, %arg1: memref<16x768xf32, #tpu.memory_space<vmem>>, %arg2: memref<768x512xbf16, #tpu.memory_space<vmem>>, %arg3: memref<512x256xbf16, #tpu.memory_space<vmem>>, %arg4: memref<256x128xbf16, #tpu.memory_space<vmem>>, %arg5: memref<16x128xf32, #tpu.memory_space<vmem>>) attributes {dimension_semantics = [#tpu.dimension_semantics<parallel>], iteration_bounds = array<i64: 1>, scalar_prefetch = 0 : i64, scratch_operands = 0 : i64, tpu.core_type = #tpu.core_type<tc>, window_params = [{transform_indices = @transform_0, window_bounds = array<i64: 16, 768>}, {pipeline_mode = #tpu.pipeline_mode<synchronous>, transform_indices = @transform_1, window_bounds = array<i64: 768, 512>}, {pipeline_mode = #tpu.pipeline_mode<synchronous>, transform_indices = @transform_2, window_bounds = array<i64: 512, 256>}, {pipeline_mode = #tpu.pipeline_mode<synchronous>, transform_indices = @transform_3, window_bounds = array<i64: 256, 128>}, {transform_indices = @transform_4, window_bounds = array<i64: 16, 128>}]} {
    %c0 = arith.constant 0 : index
    %c0_0 = arith.constant 0 : index
    %0 = vector.load %arg1[%c0, %c0_0] : memref<16x768xf32, #tpu.memory_space<vmem>>, vector<16x768xf32>
    %1 = arith.truncf %0 : vector<16x768xf32> to vector<16x768xbf16>
    %c0_1 = arith.constant 0 : index
    %c0_2 = arith.constant 0 : index
    %2 = vector.load %arg2[%c0_1, %c0_2] : memref<768x512xbf16, #tpu.memory_space<vmem>>, vector<768x512xbf16>
    %cst = arith.constant dense<0.000000e+00> : vector<16x512xf32>
    %3 = tpu.matmul %1, %2, %cst {dimension_numbers = #tpu.dot_dimension_numbers<[1], [0], [0], [1], [0, 0, 1, 1], [], []>} : vector<16x768xbf16>, vector<768x512xbf16>, vector<16x512xf32> -> vector<16x512xf32>
    %4 = arith.mulf %3, %3 : vector<16x512xf32>
    %cst_3 = arith.constant dense<0.000000e+00> : vector<16xf32>
    %5 = vector.multi_reduction <add>, %4, %cst_3 [1] : vector<16x512xf32> to vector<16xf32>
    %6 = vector.shape_cast %5 : vector<16xf32> to vector<16x1xf32>
    %cst_4 = arith.constant 9.99999996E-13 : f32
    %7 = vector.broadcast %cst_4 : f32 to vector<16x1xf32>
    %8 = arith.addf %6, %7 : vector<16x1xf32>
    %9 = math.rsqrt %8 : vector<16x1xf32>
    %10 = vector.broadcast %9 : vector<16x1xf32> to vector<16x512xf32>
    %11 = arith.mulf %3, %10 : vector<16x512xf32>
    %12 = arith.truncf %11 : vector<16x512xf32> to vector<16x512xbf16>
    %c0_5 = arith.constant 0 : index
    %c0_6 = arith.constant 0 : index
    %13 = vector.load %arg3[%c0_5, %c0_6] : memref<512x256xbf16, #tpu.memory_space<vmem>>, vector<512x256xbf16>
    %cst_7 = arith.constant dense<0.000000e+00> : vector<16x256xf32>
    %14 = tpu.matmul %12, %13, %cst_7 {dimension_numbers = #tpu.dot_dimension_numbers<[1], [0], [0], [1], [0, 0, 1, 1], [], []>} : vector<16x512xbf16>, vector<512x256xbf16>, vector<16x256xf32> -> vector<16x256xf32>
    %cst_8 = arith.constant 0.000000e+00 : f32
    %15 = vector.broadcast %cst_8 : f32 to vector<16x256xf32>
    %16 = arith.maximumf %14, %15 : vector<16x256xf32>
    %17 = arith.truncf %16 : vector<16x256xf32> to vector<16x256xbf16>
    %c0_9 = arith.constant 0 : index
    %c0_10 = arith.constant 0 : index
    %18 = vector.load %arg4[%c0_9, %c0_10] : memref<256x128xbf16, #tpu.memory_space<vmem>>, vector<256x128xbf16>
    %cst_11 = arith.constant dense<0.000000e+00> : vector<16x128xf32>
    %19 = tpu.matmul %17, %18, %cst_11 {dimension_numbers = #tpu.dot_dimension_numbers<[1], [0], [0], [1], [0, 0, 1, 1], [], []>} : vector<16x256xbf16>, vector<256x128xbf16>, vector<16x128xf32> -> vector<16x128xf32>
    %c0_12 = arith.constant 0 : index
    %c0_13 = arith.constant 0 : index
    %20 = vector.load %arg5[%c0_12, %c0_13] : memref<16x128xf32, #tpu.memory_space<vmem>>, vector<16x128xf32>
    tpu.vector_store %arg5[%c0_12, %c0_13], %19 {strides = array<i32>} : memref<16x128xf32, #tpu.memory_space<vmem>>, vector<16x128xf32>,
    return
  }
  func.func @transform_0(%arg0: i32) -> (i32, i32) {
    %c0_i32 = arith.constant 0 : i32
    %c0_i32_0 = arith.constant 0 : i32
    return %arg0, %c0_i32 : i32, i32
  }
  func.func @transform_1(%arg0: i32) -> (i32, i32) {
    %c0_i32 = arith.constant 0 : i32
    %c0_i32_0 = arith.constant 0 : i32
    %c0_i32_1 = arith.constant 0 : i32
    return %c0_i32, %c0_i32_0 : i32, i32
  }
  func.func @transform_2(%arg0: i32) -> (i32, i32) {
    %c0_i32 = arith.constant 0 : i32
    %c0_i32_0 = arith.constant 0 : i32
    %c0_i32_1 = arith.constant 0 : i32
    return %c0_i32, %c0_i32_0 : i32, i32
  }
  func.func @transform_3(%arg0: i32) -> (i32, i32) {
    %c0_i32 = arith.constant 0 : i32
    %c0_i32_0 = arith.constant 0 : i32
    %c0_i32_1 = arith.constant 0 : i32
    return %c0_i32, %c0_i32_0 : i32, i32
  }
  func.func @transform_4(%arg0: i32) -> (i32, i32) {
    %c0_i32 = arith.constant 0 : i32
    %c0_i32_0 = arith.constant 0 : i32
    return %arg0, %c0_i32 : i32, i32
  }
}

</mosaic_0001>

<llo_original>
// kernel: tpu_custom_call.1
$region0: #{tpu_custom_call.1}
  #allocation0 [shape = 'u32[]', space=smem, size = 0x4, offset = 0x4, fixed_abs, tag = 'smem constant byte address 0x4 - core index']
  #allocation1 [shape = 'u32[72,128]{1,0:T(1,128)}', space=vmem, size = 0x9000, scoped, tag = 'internal scratch']
  %s0 = inlined_call_operand.hbm [shape: f32[16,768], index: 0, kind: input, shape index: {}]
  %s1 = inlined_call_operand.hbm [shape: bf16[768,512], index: 1, kind: input, shape index: {}]
  %s2 = inlined_call_operand.hbm [shape: bf16[512,256], index: 2, kind: input, shape index: {}]
  %s3 = inlined_call_operand.hbm [shape: bf16[256,128], index: 3, kind: input, shape index: {}]
  %s4 = inlined_call_operand.hbm [shape: f32[16,128], index: 4, kind: output, shape index: {}]
  %s5 = sld [smem:[#allocation0]]
  $region42: #{tpu_custom_call.1} parent=0
    _
  %s7 = ssub.s32 1, %s5
  %s8 = scalar_select 0, %s7, %s5
  $region1: #{tpu_custom_call.1} parent=0
    #allocation2 [shape = 'u8[49152]{0}', space=vmem, size = 0xc000, scoped, tag = 'input window, operand 0, single buffered']
    #allocation3 [shape = 's32[1]{0}', space=sflag, size = 0x4, scoped, tag = 'scoped memory for tpu_custom_call.1']
    #allocation4 [shape = 's32[1]{0}', space=sflag, size = 0x4, scoped, tag = 'scoped memory for tpu_custom_call.1']
    #allocation5 [shape = 'u8[786432]{0}', space=vmem, size = 0xc0000, scoped, tag = 'input window, operand 1, single buffered']
    #allocation6 [shape = 's32[1]{0}', space=sflag, size = 0x4, scoped, tag = 'scoped memory for tpu_custom_call.1']
    #allocation7 [shape = 'u8[262144]{0}', space=vmem, size = 0x40000, scoped, tag = 'input window, operand 2, single buffered']
    #allocation8 [shape = 'u8[65536]{0}', space=vmem, size = 0x10000, scoped, tag = 'input window, operand 3, single buffered']
    #allocation9 [shape = 's32[1]{0}', space=sflag, size = 0x4, scoped, tag = 'scoped memory for tpu_custom_call.1']
    #allocation10 [shape = 'u8[8192]{0}', space=vmem, size = 0x2000, scoped, tag = 'output window, operand 0, single buffered']
    %9 = vsyncpa [#allocation3], 0
    %10 = vsyncpa [#allocation6], 0
    %11 = vsyncpa [#allocation9], 0
    %12 = vsyncpa [#allocation4], 0
    // Predicated region
    $region2: #{tpu_custom_call.1} parent=1 // pred_check
      _
    $region3: #{tpu_custom_call.1} parent=1 // pred_check_branch
      %14 = sbr.rel (0) target = $region5
    $region4: #{tpu_custom_call.1} parent=1 // pred_region
      %16 = vsyncadd [#allocation3], 0
      %s17 = sshll.u32 %s0, 4
      %s18 = int_to_ptr.hbm [resolvable:$true] %s17
      %s19 = sshll.u32 [#allocation2], 4
      %s20 = int_to_ptr.vmem [resolvable:$true] %s19
      %25 = dma.hbm_to_vmem [thread:$0]  %s18, 1536, %s20, [#allocation3], 768, 768, 48
    $region5: #{tpu_custom_call.1} parent=1 // pred_fallthru
      _
    // Predicated region
    $region6: #{tpu_custom_call.1} parent=1 // pred_check
      _
    $region7: #{tpu_custom_call.1} parent=1 // pred_check_branch
      %27 = sbr.rel (0) target = $region9
    $region8: #{tpu_custom_call.1} parent=1 // pred_region
      %29 = vsyncadd [#allocation6], 0
      %s30 = sshll.u32 %s1, 4
      %s31 = int_to_ptr.hbm [resolvable:$true] %s30
      %s32 = sshll.u32 [#allocation5], 4
      %s33 = int_to_ptr.vmem [resolvable:$true] %s32
      %38 = dma.hbm_to_vmem [thread:$0]  %s31, 24576, %s33, [#allocation6], 256, 256, 16
    $region9: #{tpu_custom_call.1} parent=1 // pred_fallthru
      _
    // Predicated region
    $region10: #{tpu_custom_call.1} parent=1 // pred_check
      _
    $region11: #{tpu_custom_call.1} parent=1 // pred_check_branch
      %40 = sbr.rel (0) target = $region13
    $region12: #{tpu_custom_call.1} parent=1 // pred_region
      %42 = vsyncadd [#allocation6], 0
      %s43 = sshll.u32 %s2, 4
      %s44 = int_to_ptr.hbm [resolvable:$true] %s43
      %s45 = sshll.u32 [#allocation7], 4
      %s46 = int_to_ptr.vmem [resolvable:$true] %s45
      %51 = dma.hbm_to_vmem [thread:$0]  %s44, 8192, %s46, [#allocation6], 128, 128, 8
    $region13: #{tpu_custom_call.1} parent=1 // pred_fallthru
      _
    // Predicated region
    $region14: #{tpu_custom_call.1} parent=1 // pred_check
      _
    $region15: #{tpu_custom_call.1} parent=1 // pred_check_branch
      %53 = sbr.rel (0) target = $region17
    $region16: #{tpu_custom_call.1} parent=1 // pred_region
      %55 = vsyncadd [#allocation9], 0
      %s56 = sshll.u32 %s3, 4
      %s57 = int_to_ptr.hbm [resolvable:$true] %s56
      %s58 = sshll.u32 [#allocation8], 4
      %s59 = int_to_ptr.vmem [resolvable:$true] %s58
      %64 = dma.hbm_to_vmem [thread:$0]  %s57, 2048, %s59, [#allocation9], 64, 64, 4
    $region17: #{tpu_custom_call.1} parent=1 // pred_fallthru
      _
    // Predicated region
    $region18: #{tpu_custom_call.1} parent=1 // pred_check
      _
    $region19: #{tpu_custom_call.1} parent=1 // pred_check_branch
      %66 = sbr.rel (0) target = $region21
    $region20: #{tpu_custom_call.1} parent=1 // pred_region
      %68 = dma.done [#allocation3], 1536
    $region21: #{tpu_custom_call.1} parent=1 // pred_fallthru
      _
    // Predicated region
    $region22: #{tpu_custom_call.1} parent=1 // pred_check
      _
    $region23: #{tpu_custom_call.1} parent=1 // pred_check_branch
      %70 = sbr.rel (0) target = $region25
    $region24: #{tpu_custom_call.1} parent=1 // pred_region
      %72 = dma.done [#allocation6], 24576
    $region25: #{tpu_custom_call.1} parent=1 // pred_fallthru
      _
    // Predicated region
    $region26: #{tpu_custom_call.1} parent=1 // pred_check
      _
    $region27: #{tpu_custom_call.1} parent=1 // pred_check_branch
      %74 = sbr.rel (0) target = $region29
    $region28: #{tpu_custom_call.1} parent=1 // pred_region
      %76 = dma.done [#allocation6], 8192
    $region29: #{tpu_custom_call.1} parent=1 // pred_fallthru
      _
    // Predicated region
    $region30: #{tpu_custom_call.1} parent=1 // pred_check
      _
    $region31: #{tpu_custom_call.1} parent=1 // pred_check_branch
      %78 = sbr.rel (0) target = $region33
    $region32: #{tpu_custom_call.1} parent=1 // pred_region
      %80 = dma.done [#allocation9], 2048
    $region33: #{tpu_custom_call.1} parent=1 // pred_fallthru
      _
    %v81 = vld [vmem:[#allocation2] sm:$0xff]
    %v82 = vld [vmem:[#allocation2 + $0x8] sm:$0xff]
    %v83 = vld [vmem:[#allocation2 + $0x10] sm:$0xff]
    %v84 = vld [vmem:[#allocation2 + $0x18] sm:$0xff]
    %v85 = vld [vmem:[#allocation2 + $0x20] sm:$0xff]
    %v86 = vld [vmem:[#allocation2 + $0x28] sm:$0xff]
    %v87 = vld [vmem:[#allocation2 + $0x30] sm:$0xff]
    %v88 = vld [vmem:[#allocation2 + $0x38] sm:$0xff]
    %v89 = vld [vmem:[#allocation2 + $0x40] sm:$0xff]
    %v90 = vld [vmem:[#allocation2 + $0x48] sm:$0xff]
    %v91 = vld [vmem:[#allocation2 + $0x50] sm:$0xff]
    %v92 = vld [vmem:[#allocation2 + $0x58] sm:$0xff]
    %v93 = vpack.c.bf16 %v87, %v81
    %v94 = vpack.c.bf16 %v88, %v82
    %v95 = vpack.c.bf16 %v89, %v83
    %v96 = vpack.c.bf16 %v90, %v84
    %v97 = vpack.c.bf16 %v91, %v85
    %v98 = vpack.c.bf16 %v92, %v86
    %v99 = vld [vmem:[#allocation5] sm:$0xff]
    %v100 = vld [vmem:[#allocation5 + $0x8] sm:$0xff]
    %v101 = vld [vmem:[#allocation5 + $0x10] sm:$0xff]
    %v102 = vld [vmem:[#allocation5 + $0x18] sm:$0xff]
    %v103 = vld [vmem:[#allocation5 + $0x20] sm:$0xff]
    %v104 = vld [vmem:[#allocation5 + $0x28] sm:$0xff]
    %v105 = vld [vmem:[#allocation5 + $0x30] sm:$0xff]
    %v106 = vld [vmem:[#allocation5 + $0x38] sm:$0xff]
    %v107 = vld [vmem:[#allocation5 + $0x40] sm:$0xff]
    %v108 = vld [vmem:[#allocation5 + $0x48] sm:$0xff]
    %v109 = vld [vmem:[#allocation5 + $0x50] sm:$0xff]
    %v110 = vld [vmem:[#allocation5 + $0x58] sm:$0xff]
    %v111 = vld [vmem:[#allocation5 + $0x60] sm:$0xff]
    %v112 = vld [vmem:[#allocation5 + $0x68] sm:$0xff]
    %v113 = vld [vmem:[#allocation5 + $0x70] sm:$0xff]
    %v114 = vld [vmem:[#allocation5 + $0x78] sm:$0xff]
    %v115 = vld [vmem:[#allocation5 + $0x80] sm:$0xff]
    %v116 = vld [vmem:[#allocation5 + $0x88] sm:$0xff]
    %v117 = vld [vmem:[#allocation5 + $0x90] sm:$0xff]
    %v118 = vld [vmem:[#allocation5 + $0x98] sm:$0xff]
    %v119 = vld [vmem:[#allocation5 + $0xa0] sm:$0xff]
    %v120 = vld [vmem:[#allocation5 + $0xa8] sm:$0xff]
    %v121 = vld [vmem:[#allocation5 + $0xb0] sm:$0xff]
    %v122 = vld [vmem:[#allocation5 + $0xb8] sm:$0xff]
    %v123 = vld [vmem:[#allocation5 + $0xc0] sm:$0xff]
    %v124 = vld [vmem:[#allocation5 + $0xc8] sm:$0xff]
    %v125 = vld [vmem:[#allocation5 + $0xd0] sm:$0xff]
    %v126 = vld [vmem:[#allocation5 + $0xd8] sm:$0xff]
    %v127 = vld [vmem:[#allocation5 + $0xe0] sm:$0xff]
    %v128 = vld [vmem:[#allocation5 + $0xe8] sm:$0xff]
    %v129 = vld [vmem:[#allocation5 + $0xf0] sm:$0xff]
    %v130 = vld [vmem:[#allocation5 + $0xf8] sm:$0xff]
    %v131 = vld [vmem:[#allocation5 + $0x100] sm:$0xff]
    %v132 = vld [vmem:[#allocation5 + $0x108] sm:$0xff]
    %v133 = vld [vmem:[#allocation5 + $0x110] sm:$0xff]
    %v134 = vld [vmem:[#allocation5 + $0x118] sm:$0xff]
    %v135 = vld [vmem:[#allocation5 + $0x120] sm:$0xff]
    %v136 = vld [vmem:[#allocation5 + $0x128] sm:$0xff]
    %v137 = vld [vmem:[#allocation5 + $0x130] sm:$0xff]
    %v138 = vld [vmem:[#allocation5 + $0x138] sm:$0xff]
    %v139 = vld [vmem:[#allocation5 + $0x140] sm:$0xff]
    %v140 = vld [vmem:[#allocation5 + $0x148] sm:$0xff]
    %v141 = vld [vmem:[#allocation5 + $0x150] sm:$0xff]
    %v142 = vld [vmem:[#allocation5 + $0x158] sm:$0xff]
    %v143 = vld [vmem:[#allocation5 + $0x160] sm:$0xff]
    %v144 = vld [vmem:[#allocation5 + $0x168] sm:$0xff]
    %v145 = vld [vmem:[#allocation5 + $0x170] sm:$0xff]
    %v146 = vld [vmem:[#allocation5 + $0x178] sm:$0xff]
    %v147 = vld [vmem:[#allocation5 + $0x180] sm:$0xff]
    %v148 = vld [vmem:[#allocation5 + $0x188] sm:$0xff]
    %v149 = vld [vmem:[#allocation5 + $0x190] sm:$0xff]
    %v150 = vld [vmem:[#allocation5 + $0x198] sm:$0xff]
    %v151 = vld [vmem:[#allocation5 + $0x1a0] sm:$0xff]
    %v152 = vld [vmem:[#allocation5 + $0x1a8] sm:$0xff]
    %v153 = vld [vmem:[#allocation5 + $0x1b0] sm:$0xff]
    %v154 = vld [vmem:[#allocation5 + $0x1b8] sm:$0xff]
    %v155 = vld [vmem:[#allocation5 + $0x1c0] sm:$0xff]
    %v156 = vld [vmem:[#allocation5 + $0x1c8] sm:$0xff]
    %v157 = vld [vmem:[#allocation5 + $0x1d0] sm:$0xff]
    %v158 = vld [vmem:[#allocation5 + $0x1d8] sm:$0xff]
    %v159 = vld [vmem:[#allocation5 + $0x1e0] sm:$0xff]
    %v160 = vld [vmem:[#allocation5 + $0x1e8] sm:$0xff]
    %v161 = vld [vmem:[#allocation5 + $0x1f0] sm:$0xff]
    %v162 = vld [vmem:[#allocation5 + $0x1f8] sm:$0xff]
    %v163 = vld [vmem:[#allocation5 + $0x200] sm:$0xff]
    %v164 = vld [vmem:[#allocation5 + $0x208] sm:$0xff]
    %v165 = vld [vmem:[#allocation5 + $0x210] sm:$0xff]
    %v166 = vld [vmem:[#allocation5 + $0x218] sm:$0xff]
    %v167 = vld [vmem:[#allocation5 + $0x220] sm:$0xff]
    %v168 = vld [vmem:[#allocation5 + $0x228] sm:$0xff]
    %v169 = vld [vmem:[#allocation5 + $0x230] sm:$0xff]
    %v170 = vld [vmem:[#allocation5 + $0x238] sm:$0xff]
    %v171 = vld [vmem:[#allocation5 + $0x240] sm:$0xff]
    %v172 = vld [vmem:[#allocation5 + $0x248] sm:$0xff]
    %v173 = vld [vmem:[#allocation5 + $0x250] sm:$0xff]
    %v174 = vld [vmem:[#allocation5 + $0x258] sm:$0xff]
    %v175 = vld [vmem:[#allocation5 + $0x260] sm:$0xff]
    %v176 = vld [vmem:[#allocation5 + $0x268] sm:$0xff]
    %v177 = vld [vmem:[#allocation5 + $0x270] sm:$0xff]
    %v178 = vld [vmem:[#allocation5 + $0x278] sm:$0xff]
    %v179 = vld [vmem:[#allocation5 + $0x280] sm:$0xff]
    %v180 = vld [vmem:[#allocation5 + $0x288] sm:$0xff]
    %v181 = vld [vmem:[#allocation5 + $0x290] sm:$0xff]
    %v182 = vld [vmem:[#allocation5 + $0x298] sm:$0xff]
    %v183 = vld [vmem:[#allocation5 + $0x2a0] sm:$0xff]
    %v184 = vld [vmem:[#allocation5 + $0x2a8] sm:$0xff]
    %v185 = vld [vmem:[#allocation5 + $0x2b0] sm:$0xff]
    %v186 = vld [vmem:[#allocation5 + $0x2b8] sm:$0xff]
    %v187 = vld [vmem:[#allocation5 + $0x2c0] sm:$0xff]
    %v188 = vld [vmem:[#allocation5 + $0x2c8] sm:$0xff]
    %v189 = vld [vmem:[#allocation5 + $0x2d0] sm:$0xff]
    %v190 = vld [vmem:[#allocation5 + $0x2d8] sm:$0xff]
    %v191 = vld [vmem:[#allocation5 + $0x2e0] sm:$0xff]
    %v192 = vld [vmem:[#allocation5 + $0x2e8] sm:$0xff]
    %v193 = vld [vmem:[#allocation5 + $0x2f0] sm:$0xff]
    %v194 = vld [vmem:[#allocation5 + $0x2f8] sm:$0xff]
    %v195 = vld [vmem:[#allocation5 + $0x300] sm:$0xff]
    %v196 = vld [vmem:[#allocation5 + $0x308] sm:$0xff]
    %v197 = vld [vmem:[#allocation5 + $0x310] sm:$0xff]
    %v198 = vld [vmem:[#allocation5 + $0x318] sm:$0xff]
    %v199 = vld [vmem:[#allocation5 + $0x320] sm:$0xff]
    %v200 = vld [vmem:[#allocation5 + $0x328] sm:$0xff]
    %v201 = vld [vmem:[#allocation5 + $0x330] sm:$0xff]
    %v202 = vld [vmem:[#allocation5 + $0x338] sm:$0xff]
    %v203 = vld [vmem:[#allocation5 + $0x340] sm:$0xff]
    %v204 = vld [vmem:[#allocation5 + $0x348] sm:$0xff]
    %v205 = vld [vmem:[#allocation5 + $0x350] sm:$0xff]
    %v206 = vld [vmem:[#allocation5 + $0x358] sm:$0xff]
    %v207 = vld [vmem:[#allocation5 + $0x360] sm:$0xff]
    %v208 = vld [vmem:[#allocation5 + $0x368] sm:$0xff]
    %v209 = vld [vmem:[#allocation5 + $0x370] sm:$0xff]
    %v210 = vld [vmem:[#allocation5 + $0x378] sm:$0xff]
    %v211 = vld [vmem:[#allocation5 + $0x380] sm:$0xff]
    %v212 = vld [vmem:[#allocation5 + $0x388] sm:$0xff]
    %v213 = vld [vmem:[#allocation5 + $0x390] sm:$0xff]
    %v214 = vld [vmem:[#allocation5 + $0x398] sm:$0xff]
    %v215 = vld [vmem:[#allocation5 + $0x3a0] sm:$0xff]
    %v216 = vld [vmem:[#allocation5 + $0x3a8] sm:$0xff]
    %v217 = vld [vmem:[#allocation5 + $0x3b0] sm:$0xff]
    %v218 = vld [vmem:[#allocation5 + $0x3b8] sm:$0xff]
    %v219 = vld [vmem:[#allocation5 + $0x3c0] sm:$0xff]
    %v220 = vld [vmem:[#allocation5 + $0x3c8] sm:$0xff]
    %v221 = vld [vmem:[#allocation5 + $0x3d0] sm:$0xff]
    %v222 = vld [vmem:[#allocation5 + $0x3d8] sm:$0xff]
    %v223 = vld [vmem:[#allocation5 + $0x3e0] sm:$0xff]
    %v224 = vld [vmem:[#allocation5 + $0x3e8] sm:$0xff]
    %v225 = vld [vmem:[#allocation5 + $0x3f0] sm:$0xff]
    %v226 = vld [vmem:[#allocation5 + $0x3f8] sm:$0xff]
    %v227 = vld [vmem:[#allocation5 + $0x400] sm:$0xff]
    %v228 = vld [vmem:[#allocation5 + $0x408] sm:$0xff]
    %v229 = vld [vmem:[#allocation5 + $0x410] sm:$0xff]
    %v230 = vld [vmem:[#allocation5 + $0x418] sm:$0xff]
    %v231 = vld [vmem:[#allocation5 + $0x420] sm:$0xff]
    %v232 = vld [vmem:[#allocation5 + $0x428] sm:$0xff]
    %v233 = vld [vmem:[#allocation5 + $0x430] sm:$0xff]
    %v234 = vld [vmem:[#allocation5 + $0x438] sm:$0xff]
    %v235 = vld [vmem:[#allocation5 + $0x440] sm:$0xff]
    %v236 = vld [vmem:[#allocation5 + $0x448] sm:$0xff]
    %v237 = vld [vmem:[#allocation5 + $0x450] sm:$0xff]
    %v238 = vld [vmem:[#allocation5 + $0x458] sm:$0xff]
    %v239 = vld [vmem:[#allocation5 + $0x460] sm:$0xff]
    %v240 = vld [vmem:[#allocation5 + $0x468] sm:$0xff]
    %v241 = vld [vmem:[#allocation5 + $0x470] sm:$0xff]
    %v242 = vld [vmem:[#allocation5 + $0x478] sm:$0xff]
    %v243 = vld [vmem:[#allocation5 + $0x480] sm:$0xff]
    %v244 = vld [vmem:[#allocation5 + $0x488] sm:$0xff]
    %v245 = vld [vmem:[#allocation5 + $0x490] sm:$0xff]
    %v246 = vld [vmem:[#allocation5 + $0x498] sm:$0xff]
    %v247 = vld [vmem:[#allocation5 + $0x4a0] sm:$0xff]
    %v248 = vld [vmem:[#allocation5 + $0x4a8] sm:$0xff]
    %v249 = vld [vmem:[#allocation5 + $0x4b0] sm:$0xff]
    %v250 = vld [vmem:[#allocation5 + $0x4b8] sm:$0xff]
    %v251 = vld [vmem:[#allocation5 + $0x4c0] sm:$0xff]
    %v252 = vld [vmem:[#allocation5 + $0x4c8] sm:$0xff]
    %v253 = vld [vmem:[#allocation5 + $0x4d0] sm:$0xff]
    %v254 = vld [vmem:[#allocation5 + $0x4d8] sm:$0xff]
    %v255 = vld [vmem:[#allocation5 + $0x4e0] sm:$0xff]
    %v256 = vld [vmem:[#allocation5 + $0x4e8] sm:$0xff]
    %v257 = vld [vmem:[#allocation5 + $0x4f0] sm:$0xff]
    %v258 = vld [vmem:[#allocation5 + $0x4f8] sm:$0xff]
    %v259 = vld [vmem:[#allocation5 + $0x500] sm:$0xff]
    %v260 = vld [vmem:[#allocation5 + $0x508] sm:$0xff]
    %v261 = vld [vmem:[#allocation5 + $0x510] sm:$0xff]
    %v262 = vld [vmem:[#allocation5 + $0x518] sm:$0xff]
    %v263 = vld [vmem:[#allocation5 + $0x520] sm:$0xff]
    %v264 = vld [vmem:[#allocation5 + $0x528] sm:$0xff]
    %v265 = vld [vmem:[#allocation5 + $0x530] sm:$0xff]
    %v266 = vld [vmem:[#allocation5 + $0x538] sm:$0xff]
    %v267 = vld [vmem:[#allocation5 + $0x540] sm:$0xff]
    %v268 = vld [vmem:[#allocation5 + $0x548] sm:$0xff]
    %v269 = vld [vmem:[#allocation5 + $0x550] sm:$0xff]
    %v270 = vld [vmem:[#allocation5 + $0x558] sm:$0xff]
    %v271 = vld [vmem:[#allocation5 + $0x560] sm:$0xff]
    %v272 = vld [vmem:[#allocation5 + $0x568] sm:$0xff]
    %v273 = vld [vmem:[#allocation5 + $0x570] sm:$0xff]
    %v274 = vld [vmem:[#allocation5 + $0x578] sm:$0xff]
    %v275 = vld [vmem:[#allocation5 + $0x580] sm:$0xff]
    %v276 = vld [vmem:[#allocation5 + $0x588] sm:$0xff]
    %v277 = vld [vmem:[#allocation5 + $0x590] sm:$0xff]
    %v278 = vld [vmem:[#allocation5 + $0x598] sm:$0xff]
    %v279 = vld [vmem:[#allocation5 + $0x5a0] sm:$0xff]
    %v280 = vld [vmem:[#allocation5 + $0x5a8] sm:$0xff]
    %v281 = vld [vmem:[#allocation5 + $0x5b0] sm:$0xff]
    %v282 = vld [vmem:[#allocation5 + $0x5b8] sm:$0xff]
    %v283 = vld [vmem:[#allocation5 + $0x5c0] sm:$0xff]
    %v284 = vld [vmem:[#allocation5 + $0x5c8] sm:$0xff]
    %v285 = vld [vmem:[#allocation5 + $0x5d0] sm:$0xff]
    %v286 = vld [vmem:[#allocation5 + $0x5d8] sm:$0xff]
    %v287 = vld [vmem:[#allocation5 + $0x5e0] sm:$0xff]
    %v288 = vld [vmem:[#allocation5 + $0x5e8] sm:$0xff]
    %v289 = vld [vmem:[#allocation5 + $0x5f0] sm:$0xff]
    %v290 = vld [vmem:[#allocation5 + $0x5f8] sm:$0xff]
    %v483 = vunpack.c.l.b16 %v99
    %v484 = vunpack.c.h.b16 %v99
    %v485 = vunpack.c.l.b16 %v100
    %v486 = vunpack.c.h.b16 %v100
    %v487 = vunpack.c.l.b16 %v101
    %v488 = vunpack.c.h.b16 %v101
    %v489 = vunpack.c.l.b16 %v102
    %v490 = vunpack.c.h.b16 %v102
    %v491 = vunpack.c.l.b16 %v103
    %v492 = vunpack.c.h.b16 %v103
    %v493 = vunpack.c.l.b16 %v104
    %v494 = vunpack.c.h.b16 %v104
    %v495 = vunpack.c.l.b16 %v105
    %v496 = vunpack.c.h.b16 %v105
    %v497 = vunpack.c.l.b16 %v106
    %v498 = vunpack.c.h.b16 %v106
    %v499 = vunpack.c.l.b16 %v107
    %v500 = vunpack.c.h.b16 %v107
    %v501 = vunpack.c.l.b16 %v108
    %v502 = vunpack.c.h.b16 %v108
    %v503 = vunpack.c.l.b16 %v109
    %v504 = vunpack.c.h.b16 %v109
    %v505 = vunpack.c.l.b16 %v110
    %v506 = vunpack.c.h.b16 %v110
    %v507 = vunpack.c.l.b16 %v111
    %v508 = vunpack.c.h.b16 %v111
    %v509 = vunpack.c.l.b16 %v112
    %v510 = vunpack.c.h.b16 %v112
    %v511 = vunpack.c.l.b16 %v113
    %v512 = vunpack.c.h.b16 %v113
    %v513 = vunpack.c.l.b16 %v114
    %v514 = vunpack.c.h.b16 %v114
    %v515 = vunpack.c.l.b16 %v115
    %v516 = vunpack.c.h.b16 %v115
    %v517 = vunpack.c.l.b16 %v116
    %v518 = vunpack.c.h.b16 %v116
    %v519 = vunpack.c.l.b16 %v117
    %v520 = vunpack.c.h.b16 %v117
    %v521 = vunpack.c.l.b16 %v118
    %v522 = vunpack.c.h.b16 %v118
    %v523 = vunpack.c.l.b16 %v119
    %v524 = vunpack.c.h.b16 %v119
    %v525 = vunpack.c.l.b16 %v120
    %v526 = vunpack.c.h.b16 %v120
    %v527 = vunpack.c.l.b16 %v121
    %v528 = vunpack.c.h.b16 %v121
    %v529 = vunpack.c.l.b16 %v122
    %v530 = vunpack.c.h.b16 %v122
    %v531 = vunpack.c.l.b16 %v123
    %v532 = vunpack.c.h.b16 %v123
    %v533 = vunpack.c.l.b16 %v124
    %v534 = vunpack.c.h.b16 %v124
    %v535 = vunpack.c.l.b16 %v125
    %v536 = vunpack.c.h.b16 %v125
    %v537 = vunpack.c.l.b16 %v126
    %v538 = vunpack.c.h.b16 %v126
    %v539 = vunpack.c.l.b16 %v127
    %v540 = vunpack.c.h.b16 %v127
    %v541 = vunpack.c.l.b16 %v128
    %v542 = vunpack.c.h.b16 %v128
    %v543 = vunpack.c.l.b16 %v129
    %v544 = vunpack.c.h.b16 %v129
    %v545 = vunpack.c.l.b16 %v130
    %v546 = vunpack.c.h.b16 %v130
    %v547 = vunpack.c.l.b16 %v131
    %v548 = vunpack.c.h.b16 %v131
    %v549 = vunpack.c.l.b16 %v132
    %v550 = vunpack.c.h.b16 %v132
    %v551 = vunpack.c.l.b16 %v133
    %v552 = vunpack.c.h.b16 %v133
    %v553 = vunpack.c.l.b16 %v134
    %v554 = vunpack.c.h.b16 %v134
    %v555 = vunpack.c.l.b16 %v135
    %v556 = vunpack.c.h.b16 %v135
    %v557 = vunpack.c.l.b16 %v136
    %v558 = vunpack.c.h.b16 %v136
    %v559 = vunpack.c.l.b16 %v137
    %v560 = vunpack.c.h.b16 %v137
    %v561 = vunpack.c.l.b16 %v138
    %v562 = vunpack.c.h.b16 %v138
    %v563 = vunpack.c.l.b16 %v139
    %v564 = vunpack.c.h.b16 %v139
    %v565 = vunpack.c.l.b16 %v140
    %v566 = vunpack.c.h.b16 %v140
    %v567 = vunpack.c.l.b16 %v141
    %v568 = vunpack.c.h.b16 %v141
    %v569 = vunpack.c.l.b16 %v142
    %v570 = vunpack.c.h.b16 %v142
    %v571 = vunpack.c.l.b16 %v143
    %v572 = vunpack.c.h.b16 %v143
    %v573 = vunpack.c.l.b16 %v144
    %v574 = vunpack.c.h.b16 %v144
    %v575 = vunpack.c.l.b16 %v145
    %v576 = vunpack.c.h.b16 %v145
    %v577 = vunpack.c.l.b16 %v146
    %v578 = vunpack.c.h.b16 %v146
    %v579 = vunpack.c.l.b16 %v147
    %v580 = vunpack.c.h.b16 %v147
    %v581 = vunpack.c.l.b16 %v148
    %v582 = vunpack.c.h.b16 %v148
    %v583 = vunpack.c.l.b16 %v149
    %v584 = vunpack.c.h.b16 %v149
    %v585 = vunpack.c.l.b16 %v150
    %v586 = vunpack.c.h.b16 %v150
    %v587 = vunpack.c.l.b16 %v151
    %v588 = vunpack.c.h.b16 %v151
    %v589 = vunpack.c.l.b16 %v152
    %v590 = vunpack.c.h.b16 %v152
    %v591 = vunpack.c.l.b16 %v153
    %v592 = vunpack.c.h.b16 %v153
    %v593 = vunpack.c.l.b16 %v154
    %v594 = vunpack.c.h.b16 %v154
    %v595 = vunpack.c.l.b16 %v155
    %v596 = vunpack.c.h.b16 %v155
    %v597 = vunpack.c.l.b16 %v156
    %v598 = vunpack.c.h.b16 %v156
    %v599 = vunpack.c.l.b16 %v157
    %v600 = vunpack.c.h.b16 %v157
    %v601 = vunpack.c.l.b16 %v158
    %v602 = vunpack.c.h.b16 %v158
    %v603 = vunpack.c.l.b16 %v159
    %v604 = vunpack.c.h.b16 %v159
    %v605 = vunpack.c.l.b16 %v160
    %v606 = vunpack.c.h.b16 %v160
    %v607 = vunpack.c.l.b16 %v161
    %v608 = vunpack.c.h.b16 %v161
    %v609 = vunpack.c.l.b16 %v162
    %v610 = vunpack.c.h.b16 %v162
    %v611 = vunpack.c.l.b16 %v163
    %v612 = vunpack.c.h.b16 %v163
    %v613 = vunpack.c.l.b16 %v164
    %v614 = vunpack.c.h.b16 %v164
    %v615 = vunpack.c.l.b16 %v165
    %v616 = vunpack.c.h.b16 %v165
    %v617 = vunpack.c.l.b16 %v166
    %v618 = vunpack.c.h.b16 %v166
    %v619 = vunpack.c.l.b16 %v167
    %v620 = vunpack.c.h.b16 %v167
    %v621 = vunpack.c.l.b16 %v168
    %v622 = vunpack.c.h.b16 %v168
    %v623 = vunpack.c.l.b16 %v169
    %v624 = vunpack.c.h.b16 %v169
    %v625 = vunpack.c.l.b16 %v170
    %v626 = vunpack.c.h.b16 %v170
    %v627 = vunpack.c.l.b16 %v171
    %v628 = vunpack.c.h.b16 %v171
    %v629 = vunpack.c.l.b16 %v172
    %v630 = vunpack.c.h.b16 %v172
    %v631 = vunpack.c.l.b16 %v173
    %v632 = vunpack.c.h.b16 %v173
    %v633 = vunpack.c.l.b16 %v174
    %v634 = vunpack.c.h.b16 %v174
    %v635 = vunpack.c.l.b16 %v175
    %v636 = vunpack.c.h.b16 %v175
    %v637 = vunpack.c.l.b16 %v176
    %v638 = vunpack.c.h.b16 %v176
    %v639 = vunpack.c.l.b16 %v177
    %v640 = vunpack.c.h.b16 %v177
    %v641 = vunpack.c.l.b16 %v178
    %v642 = vunpack.c.h.b16 %v178
    %v643 = vunpack.c.l.b16 %v179
    %v644 = vunpack.c.h.b16 %v179
    %v645 = vunpack.c.l.b16 %v180
    %v646 = vunpack.c.h.b16 %v180
    %v647 = vunpack.c.l.b16 %v181
    %v648 = vunpack.c.h.b16 %v181
    %v649 = vunpack.c.l.b16 %v182
    %v650 = vunpack.c.h.b16 %v182
    %v651 = vunpack.c.l.b16 %v183
    %v652 = vunpack.c.h.b16 %v183
    %v653 = vunpack.c.l.b16 %v184
    %v654 = vunpack.c.h.b16 %v184
    %v655 = vunpack.c.l.b16 %v185
    %v656 = vunpack.c.h.b16 %v185
    %v657 = vunpack.c.l.b16 %v186
    %v658 = vunpack.c.h.b16 %v186
    %v659 = vunpack.c.l.b16 %v187
    %v660 = vunpack.c.h.b16 %v187
    %v661 = vunpack.c.l.b16 %v188
    %v662 = vunpack.c.h.b16 %v188
    %v663 = vunpack.c.l.b16 %v189
    %v664 = vunpack.c.h.b16 %v189
    %v665 = vunpack.c.l.b16 %v190
    %v666 = vunpack.c.h.b16 %v190
    %v667 = vunpack.c.l.b16 %v191
    %v668 = vunpack.c.h.b16 %v191
    %v669 = vunpack.c.l.b16 %v192
    %v670 = vunpack.c.h.b16 %v192
    %v671 = vunpack.c.l.b16 %v193
    %v672 = vunpack.c.h.b16 %v193
    %v673 = vunpack.c.l.b16 %v194
    %v674 = vunpack.c.h.b16 %v194
    %v675 = vunpack.c.l.b16 %v195
    %v676 = vunpack.c.h.b16 %v195
    %v677 = vunpack.c.l.b16 %v196
    %v678 = vunpack.c.h.b16 %v196
    %v679 = vunpack.c.l.b16 %v197
    %v680 = vunpack.c.h.b16 %v197
    %v681 = vunpack.c.l.b16 %v198
    %v682 = vunpack.c.h.b16 %v198
    %v683 = vunpack.c.l.b16 %v199
    %v684 = vunpack.c.h.b16 %v199
    %v685 = vunpack.c.l.b16 %v200
    %v686 = vunpack.c.h.b16 %v200
    %v687 = vunpack.c.l.b16 %v201
    %v688 = vunpack.c.h.b16 %v201
    %v689 = vunpack.c.l.b16 %v202
    %v690 = vunpack.c.h.b16 %v202
    %v691 = vunpack.c.l.b16 %v203
    %v692 = vunpack.c.h.b16 %v203
    %v693 = vunpack.c.l.b16 %v204
    %v694 = vunpack.c.h.b16 %v204
    %v695 = vunpack.c.l.b16 %v205
    %v696 = vunpack.c.h.b16 %v205
    %v697 = vunpack.c.l.b16 %v206
    %v698 = vunpack.c.h.b16 %v206
    %v699 = vunpack.c.l.b16 %v207
    %v700 = vunpack.c.h.b16 %v207
    %v701 = vunpack.c.l.b16 %v208
    %v702 = vunpack.c.h.b16 %v208
    %v703 = vunpack.c.l.b16 %v209
    %v704 = vunpack.c.h.b16 %v209
    %v705 = vunpack.c.l.b16 %v210
    %v706 = vunpack.c.h.b16 %v210
    %v707 = vunpack.c.l.b16 %v211
    %v708 = vunpack.c.h.b16 %v211
    %v709 = vunpack.c.l.b16 %v212
    %v710 = vunpack.c.h.b16 %v212
    %v711 = vunpack.c.l.b16 %v213
    %v712 = vunpack.c.h.b16 %v213
    %v713 = vunpack.c.l.b16 %v214
    %v714 = vunpack.c.h.b16 %v214
    %v715 = vunpack.c.l.b16 %v215
    %v716 = vunpack.c.h.b16 %v215
    %v717 = vunpack.c.l.b16 %v216
    %v718 = vunpack.c.h.b16 %v216
    %v719 = vunpack.c.l.b16 %v217
    %v720 = vunpack.c.h.b16 %v217
    %v721 = vunpack.c.l.b16 %v218
    %v722 = vunpack.c.h.b16 %v218
    %v723 = vunpack.c.l.b16 %v219
    %v724 = vunpack.c.h.b16 %v219
    %v725 = vunpack.c.l.b16 %v220
    %v726 = vunpack.c.h.b16 %v220
    %v727 = vunpack.c.l.b16 %v221
    %v728 = vunpack.c.h.b16 %v221
    %v729 = vunpack.c.l.b16 %v222
    %v730 = vunpack.c.h.b16 %v222
    %v731 = vunpack.c.l.b16 %v223
    %v732 = vunpack.c.h.b16 %v223
    %v733 = vunpack.c.l.b16 %v224
    %v734 = vunpack.c.h.b16 %v224
    %v735 = vunpack.c.l.b16 %v225
    %v736 = vunpack.c.h.b16 %v225
    %v737 = vunpack.c.l.b16 %v226
    %v738 = vunpack.c.h.b16 %v226
    %v739 = vunpack.c.l.b16 %v227
    %v740 = vunpack.c.h.b16 %v227
    %v741 = vunpack.c.l.b16 %v228
    %v742 = vunpack.c.h.b16 %v228
    %v743 = vunpack.c.l.b16 %v229
    %v744 = vunpack.c.h.b16 %v229
    %v745 = vunpack.c.l.b16 %v230
    %v746 = vunpack.c.h.b16 %v230
    %v747 = vunpack.c.l.b16 %v231
    %v748 = vunpack.c.h.b16 %v231
    %v749 = vunpack.c.l.b16 %v232
    %v750 = vunpack.c.h.b16 %v232
    %v751 = vunpack.c.l.b16 %v233
    %v752 = vunpack.c.h.b16 %v233
    %v753 = vunpack.c.l.b16 %v234
    %v754 = vunpack.c.h.b16 %v234
    %v755 = vunpack.c.l.b16 %v235
    %v756 = vunpack.c.h.b16 %v235
    %v757 = vunpack.c.l.b16 %v236
    %v758 = vunpack.c.h.b16 %v236
    %v759 = vunpack.c.l.b16 %v237
    %v760 = vunpack.c.h.b16 %v237
    %v761 = vunpack.c.l.b16 %v238
    %v762 = vunpack.c.h.b16 %v238
    %v763 = vunpack.c.l.b16 %v239
    %v764 = vunpack.c.h.b16 %v239
    %v765 = vunpack.c.l.b16 %v240
    %v766 = vunpack.c.h.b16 %v240
    %v767 = vunpack.c.l.b16 %v241
    %v768 = vunpack.c.h.b16 %v241
    %v769 = vunpack.c.l.b16 %v242
    %v770 = vunpack.c.h.b16 %v242
    %v771 = vunpack.c.l.b16 %v243
    %v772 = vunpack.c.h.b16 %v243
    %v773 = vunpack.c.l.b16 %v244
    %v774 = vunpack.c.h.b16 %v244
    %v775 = vunpack.c.l.b16 %v245
    %v776 = vunpack.c.h.b16 %v245
    %v777 = vunpack.c.l.b16 %v246
    %v778 = vunpack.c.h.b16 %v246
    %v779 = vunpack.c.l.b16 %v247
    %v780 = vunpack.c.h.b16 %v247
    %v781 = vunpack.c.l.b16 %v248
    %v782 = vunpack.c.h.b16 %v248
    %v783 = vunpack.c.l.b16 %v249
    %v784 = vunpack.c.h.b16 %v249
    %v785 = vunpack.c.l.b16 %v250
    %v786 = vunpack.c.h.b16 %v250
    %v787 = vunpack.c.l.b16 %v251
    %v788 = vunpack.c.h.b16 %v251
    %v789 = vunpack.c.l.b16 %v252
    %v790 = vunpack.c.h.b16 %v252
    %v791 = vunpack.c.l.b16 %v253
    %v792 = vunpack.c.h.b16 %v253
    %v793 = vunpack.c.l.b16 %v254
    %v794 = vunpack.c.h.b16 %v254
    %v795 = vunpack.c.l.b16 %v255
    %v796 = vunpack.c.h.b16 %v255
    %v797 = vunpack.c.l.b16 %v256
    %v798 = vunpack.c.h.b16 %v256
    %v799 = vunpack.c.l.b16 %v257
    %v800 = vunpack.c.h.b16 %v257
    %v801 = vunpack.c.l.b16 %v258
    %v802 = vunpack.c.h.b16 %v258
    %v803 = vunpack.c.l.b16 %v259
    %v804 = vunpack.c.h.b16 %v259
    %v805 = vunpack.c.l.b16 %v260
    %v806 = vunpack.c.h.b16 %v260
    %v807 = vunpack.c.l.b16 %v261
    %v808 = vunpack.c.h.b16 %v261
    %v809 = vunpack.c.l.b16 %v262
    %v810 = vunpack.c.h.b16 %v262
    %v811 = vunpack.c.l.b16 %v263
    %v812 = vunpack.c.h.b16 %v263
    %v813 = vunpack.c.l.b16 %v264
    %v814 = vunpack.c.h.b16 %v264
    %v815 = vunpack.c.l.b16 %v265
    %v816 = vunpack.c.h.b16 %v265
    %v817 = vunpack.c.l.b16 %v266
    %v818 = vunpack.c.h.b16 %v266
    %v819 = vunpack.c.l.b16 %v267
    %v820 = vunpack.c.h.b16 %v267
    %v821 = vunpack.c.l.b16 %v268
    %v822 = vunpack.c.h.b16 %v268
    %v823 = vunpack.c.l.b16 %v269
    %v824 = vunpack.c.h.b16 %v269
    %v825 = vunpack.c.l.b16 %v270
    %v826 = vunpack.c.h.b16 %v270
    %v827 = vunpack.c.l.b16 %v271
    %v828 = vunpack.c.h.b16 %v271
    %v829 = vunpack.c.l.b16 %v272
    %v830 = vunpack.c.h.b16 %v272
    %v831 = vunpack.c.l.b16 %v273
    %v832 = vunpack.c.h.b16 %v273
    %v833 = vunpack.c.l.b16 %v274
    %v834 = vunpack.c.h.b16 %v274
    %v835 = vunpack.c.l.b16 %v275
    %v836 = vunpack.c.h.b16 %v275
    %v837 = vunpack.c.l.b16 %v276
    %v838 = vunpack.c.h.b16 %v276
    %v839 = vunpack.c.l.b16 %v277
    %v840 = vunpack.c.h.b16 %v277
    %v841 = vunpack.c.l.b16 %v278
    %v842 = vunpack.c.h.b16 %v278
    %v843 = vunpack.c.l.b16 %v279
    %v844 = vunpack.c.h.b16 %v279
    %v845 = vunpack.c.l.b16 %v280
    %v846 = vunpack.c.h.b16 %v280
    %v847 = vunpack.c.l.b16 %v281
    %v848 = vunpack.c.h.b16 %v281
    %v849 = vunpack.c.l.b16 %v282
    %v850 = vunpack.c.h.b16 %v282
    %v851 = vunpack.c.l.b16 %v283
    %v852 = vunpack.c.h.b16 %v283
    %v853 = vunpack.c.l.b16 %v284
    %v854 = vunpack.c.h.b16 %v284
    %v855 = vunpack.c.l.b16 %v285
    %v856 = vunpack.c.h.b16 %v285
    %v857 = vunpack.c.l.b16 %v286
    %v858 = vunpack.c.h.b16 %v286
    %v859 = vunpack.c.l.b16 %v287
    %v860 = vunpack.c.h.b16 %v287
    %v861 = vunpack.c.l.b16 %v288
    %v862 = vunpack.c.h.b16 %v288
    %v863 = vunpack.c.l.b16 %v289
    %v864 = vunpack.c.h.b16 %v289
    %v865 = vunpack.c.l.b16 %v290
    %v866 = vunpack.c.h.b16 %v290
    %v867 = vpack.c.b16 %v487, %v483
    %v868 = vpack.c.b16 %v488, %v484
    %v869 = vpack.c.b16 %v489, %v485
    %v870 = vpack.c.b16 %v490, %v486
    %v871 = vpack.c.b16 %v495, %v491
    %v872 = vpack.c.b16 %v496, %v492
    %v873 = vpack.c.b16 %v497, %v493
    %v874 = vpack.c.b16 %v498, %v494
    %v875 = vpack.c.b16 %v503, %v499
    %v876 = vpack.c.b16 %v504, %v500
    %v877 = vpack.c.b16 %v505, %v501
    %v878 = vpack.c.b16 %v506, %v502
    %v879 = vpack.c.b16 %v511, %v507
    %v880 = vpack.c.b16 %v512, %v508
    %v881 = vpack.c.b16 %v513, %v509
    %v882 = vpack.c.b16 %v514, %v510
    %v883 = vpack.c.b16 %v519, %v515
    %v884 = vpack.c.b16 %v520, %v516
    %v885 = vpack.c.b16 %v521, %v517
    %v886 = vpack.c.b16 %v522, %v518
    %v887 = vpack.c.b16 %v527, %v523
    %v888 = vpack.c.b16 %v528, %v524
    %v889 = vpack.c.b16 %v529, %v525
    %v890 = vpack.c.b16 %v530, %v526
    %v891 = vpack.c.b16 %v535, %v531
    %v892 = vpack.c.b16 %v536, %v532
    %v893 = vpack.c.b16 %v537, %v533
    %v894 = vpack.c.b16 %v538, %v534
    %v895 = vpack.c.b16 %v543, %v539
    %v896 = vpack.c.b16 %v544, %v540
    %v897 = vpack.c.b16 %v545, %v541
    %v898 = vpack.c.b16 %v546, %v542
    %v899 = vpack.c.b16 %v551, %v547
    %v900 = vpack.c.b16 %v552, %v548
    %v901 = vpack.c.b16 %v553, %v549
    %v902 = vpack.c.b16 %v554, %v550
    %v903 = vpack.c.b16 %v559, %v555
    %v904 = vpack.c.b16 %v560, %v556
    %v905 = vpack.c.b16 %v561, %v557
    %v906 = vpack.c.b16 %v562, %v558
    %v907 = vpack.c.b16 %v567, %v563
    %v908 = vpack.c.b16 %v568, %v564
    %v909 = vpack.c.b16 %v569, %v565
    %v910 = vpack.c.b16 %v570, %v566
    %v911 = vpack.c.b16 %v575, %v571
    %v912 = vpack.c.b16 %v576, %v572
    %v913 = vpack.c.b16 %v577, %v573
    %v914 = vpack.c.b16 %v578, %v574
    %v915 = vpack.c.b16 %v583, %v579
    %v916 = vpack.c.b16 %v584, %v580
    %v917 = vpack.c.b16 %v585, %v581
    %v918 = vpack.c.b16 %v586, %v582
    %v919 = vpack.c.b16 %v591, %v587
    %v920 = vpack.c.b16 %v592, %v588
    %v921 = vpack.c.b16 %v593, %v589
    %v922 = vpack.c.b16 %v594, %v590
    %v923 = vpack.c.b16 %v599, %v595
    %v924 = vpack.c.b16 %v600, %v596
    %v925 = vpack.c.b16 %v601, %v597
    %v926 = vpack.c.b16 %v602, %v598
    %v927 = vpack.c.b16 %v607, %v603
    %v928 = vpack.c.b16 %v608, %v604
    %v929 = vpack.c.b16 %v609, %v605
    %v930 = vpack.c.b16 %v610, %v606
    %v931 = vpack.c.b16 %v615, %v611
    %v932 = vpack.c.b16 %v616, %v612
    %v933 = vpack.c.b16 %v617, %v613
    %v934 = vpack.c.b16 %v618, %v614
    %v935 = vpack.c.b16 %v623, %v619
    %v936 = vpack.c.b16 %v624, %v620
    %v937 = vpack.c.b16 %v625, %v621
    %v938 = vpack.c.b16 %v626, %v622
    %v939 = vpack.c.b16 %v631, %v627
    %v940 = vpack.c.b16 %v632, %v628
    %v941 = vpack.c.b16 %v633, %v629
    %v942 = vpack.c.b16 %v634, %v630
    %v943 = vpack.c.b16 %v639, %v635
    %v944 = vpack.c.b16 %v640, %v636
    %v945 = vpack.c.b16 %v641, %v637
    %v946 = vpack.c.b16 %v642, %v638
    %v947 = vpack.c.b16 %v647, %v643
    %v948 = vpack.c.b16 %v648, %v644
    %v949 = vpack.c.b16 %v649, %v645
    %v950 = vpack.c.b16 %v650, %v646
    %v951 = vpack.c.b16 %v655, %v651
    %v952 = vpack.c.b16 %v656, %v652
    %v953 = vpack.c.b16 %v657, %v653
    %v954 = vpack.c.b16 %v658, %v654
    %v955 = vpack.c.b16 %v663, %v659
    %v956 = vpack.c.b16 %v664, %v660
    %v957 = vpack.c.b16 %v665, %v661
    %v958 = vpack.c.b16 %v666, %v662
    %v959 = vpack.c.b16 %v671, %v667
    %v960 = vpack.c.b16 %v672, %v668
    %v961 = vpack.c.b16 %v673, %v669
    %v962 = vpack.c.b16 %v674, %v670
    %v963 = vpack.c.b16 %v679, %v675
    %v964 = vpack.c.b16 %v680, %v676
    %v965 = vpack.c.b16 %v681, %v677
    %v966 = vpack.c.b16 %v682, %v678
    %v967 = vpack.c.b16 %v687, %v683
    %v968 = vpack.c.b16 %v688, %v684
    %v969 = vpack.c.b16 %v689, %v685
    %v970 = vpack.c.b16 %v690, %v686
    %v971 = vpack.c.b16 %v695, %v691
    %v972 = vpack.c.b16 %v696, %v692
    %v973 = vpack.c.b16 %v697, %v693
    %v974 = vpack.c.b16 %v698, %v694
    %v975 = vpack.c.b16 %v703, %v699
    %v976 = vpack.c.b16 %v704, %v700
    %v977 = vpack.c.b16 %v705, %v701
    %v978 = vpack.c.b16 %v706, %v702
    %v979 = vpack.c.b16 %v711, %v707
    %v980 = vpack.c.b16 %v712, %v708
    %v981 = vpack.c.b16 %v713, %v709
    %v982 = vpack.c.b16 %v714, %v710
    %v983 = vpack.c.b16 %v719, %v715
    %v984 = vpack.c.b16 %v720, %v716
    %v985 = vpack.c.b16 %v721, %v717
    %v986 = vpack.c.b16 %v722, %v718
    %v987 = vpack.c.b16 %v727, %v723
    %v988 = vpack.c.b16 %v728, %v724
    %v989 = vpack.c.b16 %v729, %v725
    %v990 = vpack.c.b16 %v730, %v726
    %v991 = vpack.c.b16 %v735, %v731
    %v992 = vpack.c.b16 %v736, %v732
    %v993 = vpack.c.b16 %v737, %v733
    %v994 = vpack.c.b16 %v738, %v734
    %v995 = vpack.c.b16 %v743, %v739
    %v996 = vpack.c.b16 %v744, %v740
    %v997 = vpack.c.b16 %v745, %v741
    %v998 = vpack.c.b16 %v746, %v742
    %v999 = vpack.c.b16 %v751, %v747
    %v1000 = vpack.c.b16 %v752, %v748
    %v1001 = vpack.c.b16 %v753, %v749
    %v1002 = vpack.c.b16 %v754, %v750
    %v1003 = vpack.c.b16 %v759, %v755
    %v1004 = vpack.c.b16 %v760, %v756
    %v1005 = vpack.c.b16 %v761, %v757
    %v1006 = vpack.c.b16 %v762, %v758
    %v1007 = vpack.c.b16 %v767, %v763
    %v1008 = vpack.c.b16 %v768, %v764
    %v1009 = vpack.c.b16 %v769, %v765
    %v1010 = vpack.c.b16 %v770, %v766
    %v1011 = vpack.c.b16 %v775, %v771
    %v1012 = vpack.c.b16 %v776, %v772
    %v1013 = vpack.c.b16 %v777, %v773
    %v1014 = vpack.c.b16 %v778, %v774
    %v1015 = vpack.c.b16 %v783, %v779
    %v1016 = vpack.c.b16 %v784, %v780
    %v1017 = vpack.c.b16 %v785, %v781
    %v1018 = vpack.c.b16 %v786, %v782
    %v1019 = vpack.c.b16 %v791, %v787
    %v1020 = vpack.c.b16 %v792, %v788
    %v1021 = vpack.c.b16 %v793, %v789
    %v1022 = vpack.c.b16 %v794, %v790
    %v1023 = vpack.c.b16 %v799, %v795
    %v1024 = vpack.c.b16 %v800, %v796
    %v1025 = vpack.c.b16 %v801, %v797
    %v1026 = vpack.c.b16 %v802, %v798
    %v1027 = vpack.c.b16 %v807, %v803
    %v1028 = vpack.c.b16 %v808, %v804
    %v1029 = vpack.c.b16 %v809, %v805
    %v1030 = vpack.c.b16 %v810, %v806
    %v1031 = vpack.c.b16 %v815, %v811
    %v1032 = vpack.c.b16 %v816, %v812
    %v1033 = vpack.c.b16 %v817, %v813
    %v1034 = vpack.c.b16 %v818, %v814
    %v1035 = vpack.c.b16 %v823, %v819
    %v1036 = vpack.c.b16 %v824, %v820
    %v1037 = vpack.c.b16 %v825, %v821
    %v1038 = vpack.c.b16 %v826, %v822
    %v1039 = vpack.c.b16 %v831, %v827
    %v1040 = vpack.c.b16 %v832, %v828
    %v1041 = vpack.c.b16 %v833, %v829
    %v1042 = vpack.c.b16 %v834, %v830
    %v1043 = vpack.c.b16 %v839, %v835
    %v1044 = vpack.c.b16 %v840, %v836
    %v1045 = vpack.c.b16 %v841, %v837
    %v1046 = vpack.c.b16 %v842, %v838
    %v1047 = vpack.c.b16 %v847, %v843
    %v1048 = vpack.c.b16 %v848, %v844
    %v1049 = vpack.c.b16 %v849, %v845
    %v1050 = vpack.c.b16 %v850, %v846
    %v1051 = vpack.c.b16 %v855, %v851
    %v1052 = vpack.c.b16 %v856, %v852
    %v1053 = vpack.c.b16 %v857, %v853
    %v1054 = vpack.c.b16 %v858, %v854
    %v1055 = vpack.c.b16 %v863, %v859
    %v1056 = vpack.c.b16 %v864, %v860
    %v1057 = vpack.c.b16 %v865, %v861
    %v1058 = vpack.c.b16 %v866, %v862
    %1251 = vmatpush.bf16.msra.mxu0 %v895
    %1252 = vmatpush.bf16.msra.mxu0 %v891
    %1253 = vmatpush.bf16.msra.mxu0 %v887
    %1254 = vmatpush.bf16.msra.mxu0 %v883
    %1255 = vmatpush.bf16.msra.mxu0 %v879
    %1256 = vmatpush.bf16.msra.mxu0 %v875
    %1257 = vmatpush.bf16.msra.mxu0 %v871
    %1258 = vmatpush.bf16.msra.mxu0 %v867
    %1259 = vmatmul.bf16.gmra.mxu0 %v93
    %v1260 = vpop.f32.mrf.mxu0
    %v1261 = vadd.f32 0.0, %v1260
    %v1262 = vpop.f32.mrf.mxu0
    %v1263 = vadd.f32 0.0, %v1262
    %1264 = vdwg.mxu0
    %1265 = vmatpush.bf16.msra.mxu0 %v927
    %1266 = vmatpush.bf16.msra.mxu0 %v923
    %1267 = vmatpush.bf16.msra.mxu0 %v919
    %1268 = vmatpush.bf16.msra.mxu0 %v915
    %1269 = vmatpush.bf16.msra.mxu0 %v911
    %1270 = vmatpush.bf16.msra.mxu0 %v907
    %1271 = vmatpush.bf16.msra.mxu0 %v903
    %1272 = vmatpush.bf16.msra.mxu0 %v899
    %1273 = vmatmul.bf16.gmra.mxu0 %v94
    %v1274 = vpop.f32.mrf.mxu0
    %v1275 = vadd.f32 %v1261, %v1274
    %v1276 = vpop.f32.mrf.mxu0
    %v1277 = vadd.f32 %v1263, %v1276
    %1278 = vdwg.mxu0
    %1279 = vmatpush.bf16.msra.mxu0 %v959
    %1280 = vmatpush.bf16.msra.mxu0 %v955
    %1281 = vmatpush.bf16.msra.mxu0 %v951
    %1282 = vmatpush.bf16.msra.mxu0 %v947
    %1283 = vmatpush.bf16.msra.mxu0 %v943
    %1284 = vmatpush.bf16.msra.mxu0 %v939
    %1285 = vmatpush.bf16.msra.mxu0 %v935
    %1286 = vmatpush.bf16.msra.mxu0 %v931
    %1287 = vmatmul.bf16.gmra.mxu0 %v95
    %v1288 = vpop.f32.mrf.mxu0
    %v1289 = vadd.f32 %v1275, %v1288
    %v1290 = vpop.f32.mrf.mxu0
    %v1291 = vadd.f32 %v1277, %v1290
    %1292 = vdwg.mxu0
    %1293 = vmatpush.bf16.msra.mxu0 %v991
    %1294 = vmatpush.bf16.msra.mxu0 %v987
    %1295 = vmatpush.bf16.msra.mxu0 %v983
    %1296 = vmatpush.bf16.msra.mxu0 %v979
    %1297 = vmatpush.bf16.msra.mxu0 %v975
    %1298 = vmatpush.bf16.msra.mxu0 %v971
    %1299 = vmatpush.bf16.msra.mxu0 %v967
    %1300 = vmatpush.bf16.msra.mxu0 %v963
    %1301 = vmatmul.bf16.gmra.mxu0 %v96
    %v1302 = vpop.f32.mrf.mxu0
    %v1303 = vadd.f32 %v1289, %v1302
    %v1304 = vpop.f32.mrf.mxu0
    %v1305 = vadd.f32 %v1291, %v1304
    %1306 = vdwg.mxu0
    %1307 = vmatpush.bf16.msra.mxu0 %v1023
    %1308 = vmatpush.bf16.msra.mxu0 %v1019
    %1309 = vmatpush.bf16.msra.mxu0 %v1015
    %1310 = vmatpush.bf16.msra.mxu0 %v1011
    %1311 = vmatpush.bf16.msra.mxu0 %v1007
    %1312 = vmatpush.bf16.msra.mxu0 %v1003
    %1313 = vmatpush.bf16.msra.mxu0 %v999
    %1314 = vmatpush.bf16.msra.mxu0 %v995
    %1315 = vmatmul.bf16.gmra.mxu0 %v97
    %v1316 = vpop.f32.mrf.mxu0
    %v1317 = vadd.f32 %v1303, %v1316
    %v1318 = vpop.f32.mrf.mxu0
    %v1319 = vadd.f32 %v1305, %v1318
    %1320 = vdwg.mxu0
    %1321 = vmatpush.bf16.msra.mxu0 %v1055
    %1322 = vmatpush.bf16.msra.mxu0 %v1051
    %1323 = vmatpush.bf16.msra.mxu0 %v1047
    %1324 = vmatpush.bf16.msra.mxu0 %v1043
    %1325 = vmatpush.bf16.msra.mxu0 %v1039
    %1326 = vmatpush.bf16.msra.mxu0 %v1035
    %1327 = vmatpush.bf16.msra.mxu0 %v1031
    %1328 = vmatpush.bf16.msra.mxu0 %v1027
    %1329 = vmatmul.bf16.gmra.mxu0 %v98
    %v1330 = vpop.f32.mrf.mxu0
    %v1331 = vadd.f32 %v1317, %v1330
    %v1332 = vpop.f32.mrf.mxu0
    %v1333 = vadd.f32 %v1319, %v1332
    %1334 = vdwg.mxu0
    %1335 = vmatpush.bf16.msra.mxu0 %v896
    %1336 = vmatpush.bf16.msra.mxu0 %v892
    %1337 = vmatpush.bf16.msra.mxu0 %v888
    %1338 = vmatpush.bf16.msra.mxu0 %v884
    %1339 = vmatpush.bf16.msra.mxu0 %v880
    %1340 = vmatpush.bf16.msra.mxu0 %v876
    %1341 = vmatpush.bf16.msra.mxu0 %v872
    %1342 = vmatpush.bf16.msra.mxu0 %v868
    %1343 = vmatmul.bf16.gmra.mxu0 %v93
    %v1344 = vpop.f32.mrf.mxu0
    %v1345 = vadd.f32 0.0, %v1344
    %v1346 = vpop.f32.mrf.mxu0
    %v1347 = vadd.f32 0.0, %v1346
    %1348 = vdwg.mxu0
    %1349 = vmatpush.bf16.msra.mxu0 %v928
    %1350 = vmatpush.bf16.msra.mxu0 %v924
    %1351 = vmatpush.bf16.msra.mxu0 %v920
    %1352 = vmatpush.bf16.msra.mxu0 %v916
    %1353 = vmatpush.bf16.msra.mxu0 %v912
    %1354 = vmatpush.bf16.msra.mxu0 %v908
    %1355 = vmatpush.bf16.msra.mxu0 %v904
    %1356 = vmatpush.bf16.msra.mxu0 %v900
    %1357 = vmatmul.bf16.gmra.mxu0 %v94
    %v1358 = vpop.f32.mrf.mxu0
    %v1359 = vadd.f32 %v1345, %v1358
    %v1360 = vpop.f32.mrf.mxu0
    %v1361 = vadd.f32 %v1347, %v1360
    %1362 = vdwg.mxu0
    %1363 = vmatpush.bf16.msra.mxu0 %v960
    %1364 = vmatpush.bf16.msra.mxu0 %v956
    %1365 = vmatpush.bf16.msra.mxu0 %v952
    %1366 = vmatpush.bf16.msra.mxu0 %v948
    %1367 = vmatpush.bf16.msra.mxu0 %v944
    %1368 = vmatpush.bf16.msra.mxu0 %v940
    %1369 = vmatpush.bf16.msra.mxu0 %v936
    %1370 = vmatpush.bf16.msra.mxu0 %v932
    %1371 = vmatmul.bf16.gmra.mxu0 %v95
    %v1372 = vpop.f32.mrf.mxu0
    %v1373 = vadd.f32 %v1359, %v1372
    %v1374 = vpop.f32.mrf.mxu0
    %v1375 = vadd.f32 %v1361, %v1374
    %1376 = vdwg.mxu0
    %1377 = vmatpush.bf16.msra.mxu0 %v992
    %1378 = vmatpush.bf16.msra.mxu0 %v988
    %1379 = vmatpush.bf16.msra.mxu0 %v984
    %1380 = vmatpush.bf16.msra.mxu0 %v980
    %1381 = vmatpush.bf16.msra.mxu0 %v976
    %1382 = vmatpush.bf16.msra.mxu0 %v972
    %1383 = vmatpush.bf16.msra.mxu0 %v968
    %1384 = vmatpush.bf16.msra.mxu0 %v964
    %1385 = vmatmul.bf16.gmra.mxu0 %v96
    %v1386 = vpop.f32.mrf.mxu0
    %v1387 = vadd.f32 %v1373, %v1386
    %v1388 = vpop.f32.mrf.mxu0
    %v1389 = vadd.f32 %v1375, %v1388
    %1390 = vdwg.mxu0
    %1391 = vmatpush.bf16.msra.mxu0 %v1024
    %1392 = vmatpush.bf16.msra.mxu0 %v1020
    %1393 = vmatpush.bf16.msra.mxu0 %v1016
    %1394 = vmatpush.bf16.msra.mxu0 %v1012
    %1395 = vmatpush.bf16.msra.mxu0 %v1008
    %1396 = vmatpush.bf16.msra.mxu0 %v1004
    %1397 = vmatpush.bf16.msra.mxu0 %v1000
    %1398 = vmatpush.bf16.msra.mxu0 %v996
    %1399 = vmatmul.bf16.gmra.mxu0 %v97
    %v1400 = vpop.f32.mrf.mxu0
    %v1401 = vadd.f32 %v1387, %v1400
    %v1402 = vpop.f32.mrf.mxu0
    %v1403 = vadd.f32 %v1389, %v1402
    %1404 = vdwg.mxu0
    %1405 = vmatpush.bf16.msra.mxu0 %v1056
    %1406 = vmatpush.bf16.msra.mxu0 %v1052
    %1407 = vmatpush.bf16.msra.mxu0 %v1048
    %1408 = vmatpush.bf16.msra.mxu0 %v1044
    %1409 = vmatpush.bf16.msra.mxu0 %v1040
    %1410 = vmatpush.bf16.msra.mxu0 %v1036
    %1411 = vmatpush.bf16.msra.mxu0 %v1032
    %1412 = vmatpush.bf16.msra.mxu0 %v1028
    %1413 = vmatmul.bf16.gmra.mxu0 %v98
    %v1414 = vpop.f32.mrf.mxu0
    %v1415 = vadd.f32 %v1401, %v1414
    %v1416 = vpop.f32.mrf.mxu0
    %v1417 = vadd.f32 %v1403, %v1416
    %1418 = vdwg.mxu0
    %1419 = vmatpush.bf16.msra.mxu0 %v897
    %1420 = vmatpush.bf16.msra.mxu0 %v893
    %1421 = vmatpush.bf16.msra.mxu0 %v889
    %1422 = vmatpush.bf16.msra.mxu0 %v885
    %1423 = vmatpush.bf16.msra.mxu0 %v881
    %1424 = vmatpush.bf16.msra.mxu0 %v877
    %1425 = vmatpush.bf16.msra.mxu0 %v873
    %1426 = vmatpush.bf16.msra.mxu0 %v869
    %1427 = vmatmul.bf16.gmra.mxu0 %v93
    %v1428 = vpop.f32.mrf.mxu0
    %v1429 = vadd.f32 0.0, %v1428
    %v1430 = vpop.f32.mrf.mxu0
    %v1431 = vadd.f32 0.0, %v1430
    %1432 = vdwg.mxu0
    %1433 = vmatpush.bf16.msra.mxu0 %v929
    %1434 = vmatpush.bf16.msra.mxu0 %v925
    %1435 = vmatpush.bf16.msra.mxu0 %v921
    %1436 = vmatpush.bf16.msra.mxu0 %v917
    %1437 = vmatpush.bf16.msra.mxu0 %v913
    %1438 = vmatpush.bf16.msra.mxu0 %v909
    %1439 = vmatpush.bf16.msra.mxu0 %v905
    %1440 = vmatpush.bf16.msra.mxu0 %v901
    %1441 = vmatmul.bf16.gmra.mxu0 %v94
    %v1442 = vpop.f32.mrf.mxu0
    %v1443 = vadd.f32 %v1429, %v1442
    %v1444 = vpop.f32.mrf.mxu0
    %v1445 = vadd.f32 %v1431, %v1444
    %1446 = vdwg.mxu0
    %1447 = vmatpush.bf16.msra.mxu0 %v961
    %1448 = vmatpush.bf16.msra.mxu0 %v957
    %1449 = vmatpush.bf16.msra.mxu0 %v953
    %1450 = vmatpush.bf16.msra.mxu0 %v949
    %1451 = vmatpush.bf16.msra.mxu0 %v945
    %1452 = vmatpush.bf16.msra.mxu0 %v941
    %1453 = vmatpush.bf16.msra.mxu0 %v937
    %1454 = vmatpush.bf16.msra.mxu0 %v933
    %1455 = vmatmul.bf16.gmra.mxu0 %v95
    %v1456 = vpop.f32.mrf.mxu0
    %v1457 = vadd.f32 %v1443, %v1456
    %v1458 = vpop.f32.mrf.mxu0
    %v1459 = vadd.f32 %v1445, %v1458
    %1460 = vdwg.mxu0
    %1461 = vmatpush.bf16.msra.mxu0 %v993
    %1462 = vmatpush.bf16.msra.mxu0 %v989
    %1463 = vmatpush.bf16.msra.mxu0 %v985
    %1464 = vmatpush.bf16.msra.mxu0 %v981
    %1465 = vmatpush.bf16.msra.mxu0 %v977
    %1466 = vmatpush.bf16.msra.mxu0 %v973
    %1467 = vmatpush.bf16.msra.mxu0 %v969
    %1468 = vmatpush.bf16.msra.mxu0 %v965
    %1469 = vmatmul.bf16.gmra.mxu0 %v96
    %v1470 = vpop.f32.mrf.mxu0
    %v1471 = vadd.f32 %v1457, %v1470
    %v1472 = vpop.f32.mrf.mxu0
    %v1473 = vadd.f32 %v1459, %v1472
    %1474 = vdwg.mxu0
    %1475 = vmatpush.bf16.msra.mxu0 %v1025
    %1476 = vmatpush.bf16.msra.mxu0 %v1021
    %1477 = vmatpush.bf16.msra.mxu0 %v1017
    %1478 = vmatpush.bf16.msra.mxu0 %v1013
    %1479 = vmatpush.bf16.msra.mxu0 %v1009
    %1480 = vmatpush.bf16.msra.mxu0 %v1005
    %1481 = vmatpush.bf16.msra.mxu0 %v1001
    %1482 = vmatpush.bf16.msra.mxu0 %v997
    %1483 = vmatmul.bf16.gmra.mxu0 %v97
    %v1484 = vpop.f32.mrf.mxu0
    %v1485 = vadd.f32 %v1471, %v1484
    %v1486 = vpop.f32.mrf.mxu0
    %v1487 = vadd.f32 %v1473, %v1486
    %1488 = vdwg.mxu0
    %1489 = vmatpush.bf16.msra.mxu0 %v1057
    %1490 = vmatpush.bf16.msra.mxu0 %v1053
    %1491 = vmatpush.bf16.msra.mxu0 %v1049
    %1492 = vmatpush.bf16.msra.mxu0 %v1045
    %1493 = vmatpush.bf16.msra.mxu0 %v1041
    %1494 = vmatpush.bf16.msra.mxu0 %v1037
    %1495 = vmatpush.bf16.msra.mxu0 %v1033
    %1496 = vmatpush.bf16.msra.mxu0 %v1029
    %1497 = vmatmul.bf16.gmra.mxu0 %v98
    %v1498 = vpop.f32.mrf.mxu0
    %v1499 = vadd.f32 %v1485, %v1498
    %v1500 = vpop.f32.mrf.mxu0
    %v1501 = vadd.f32 %v1487, %v1500
    %1502 = vdwg.mxu0
    %1503 = vmatpush.bf16.msra.mxu0 %v898
    %1504 = vmatpush.bf16.msra.mxu0 %v894
    %1505 = vmatpush.bf16.msra.mxu0 %v890
    %1506 = vmatpush.bf16.msra.mxu0 %v886
    %1507 = vmatpush.bf16.msra.mxu0 %v882
    %1508 = vmatpush.bf16.msra.mxu0 %v878
    %1509 = vmatpush.bf16.msra.mxu0 %v874
    %1510 = vmatpush.bf16.msra.mxu0 %v870
    %1511 = vmatmul.bf16.gmra.mxu0 %v93
    %v1512 = vpop.f32.mrf.mxu0
    %v1513 = vadd.f32 0.0, %v1512
    %v1514 = vpop.f32.mrf.mxu0
    %v1515 = vadd.f32 0.0, %v1514
    %1516 = vdwg.mxu0
    %1517 = vmatpush.bf16.msra.mxu0 %v930
    %1518 = vmatpush.bf16.msra.mxu0 %v926
    %1519 = vmatpush.bf16.msra.mxu0 %v922
    %1520 = vmatpush.bf16.msra.mxu0 %v918
    %1521 = vmatpush.bf16.msra.mxu0 %v914
    %1522 = vmatpush.bf16.msra.mxu0 %v910
    %1523 = vmatpush.bf16.msra.mxu0 %v906
    %1524 = vmatpush.bf16.msra.mxu0 %v902
    %1525 = vmatmul.bf16.gmra.mxu0 %v94
    %v1526 = vpop.f32.mrf.mxu0
    %v1527 = vadd.f32 %v1513, %v1526
    %v1528 = vpop.f32.mrf.mxu0
    %v1529 = vadd.f32 %v1515, %v1528
    %1530 = vdwg.mxu0
    %1531 = vmatpush.bf16.msra.mxu0 %v962
    %1532 = vmatpush.bf16.msra.mxu0 %v958
    %1533 = vmatpush.bf16.msra.mxu0 %v954
    %1534 = vmatpush.bf16.msra.mxu0 %v950
    %1535 = vmatpush.bf16.msra.mxu0 %v946
    %1536 = vmatpush.bf16.msra.mxu0 %v942
    %1537 = vmatpush.bf16.msra.mxu0 %v938
    %1538 = vmatpush.bf16.msra.mxu0 %v934
    %1539 = vmatmul.bf16.gmra.mxu0 %v95
    %v1540 = vpop.f32.mrf.mxu0
    %v1541 = vadd.f32 %v1527, %v1540
    %v1542 = vpop.f32.mrf.mxu0
    %v1543 = vadd.f32 %v1529, %v1542
    %1544 = vdwg.mxu0
    %1545 = vmatpush.bf16.msra.mxu0 %v994
    %1546 = vmatpush.bf16.msra.mxu0 %v990
    %1547 = vmatpush.bf16.msra.mxu0 %v986
    %1548 = vmatpush.bf16.msra.mxu0 %v982
    %1549 = vmatpush.bf16.msra.mxu0 %v978
    %1550 = vmatpush.bf16.msra.mxu0 %v974
    %1551 = vmatpush.bf16.msra.mxu0 %v970
    %1552 = vmatpush.bf16.msra.mxu0 %v966
    %1553 = vmatmul.bf16.gmra.mxu0 %v96
    %v1554 = vpop.f32.mrf.mxu0
    %v1555 = vadd.f32 %v1541, %v1554
    %v1556 = vpop.f32.mrf.mxu0
    %v1557 = vadd.f32 %v1543, %v1556
    %1558 = vdwg.mxu0
    %1559 = vmatpush.bf16.msra.mxu0 %v1026
    %1560 = vmatpush.bf16.msra.mxu0 %v1022
    %1561 = vmatpush.bf16.msra.mxu0 %v1018
    %1562 = vmatpush.bf16.msra.mxu0 %v1014
    %1563 = vmatpush.bf16.msra.mxu0 %v1010
    %1564 = vmatpush.bf16.msra.mxu0 %v1006
    %1565 = vmatpush.bf16.msra.mxu0 %v1002
    %1566 = vmatpush.bf16.msra.mxu0 %v998
    %1567 = vmatmul.bf16.gmra.mxu0 %v97
    %v1568 = vpop.f32.mrf.mxu0
    %v1569 = vadd.f32 %v1555, %v1568
    %v1570 = vpop.f32.mrf.mxu0
    %v1571 = vadd.f32 %v1557, %v1570
    %1572 = vdwg.mxu0
    %1573 = vmatpush.bf16.msra.mxu0 %v1058
    %1574 = vmatpush.bf16.msra.mxu0 %v1054
    %1575 = vmatpush.bf16.msra.mxu0 %v1050
    %1576 = vmatpush.bf16.msra.mxu0 %v1046
    %1577 = vmatpush.bf16.msra.mxu0 %v1042
    %1578 = vmatpush.bf16.msra.mxu0 %v1038
    %1579 = vmatpush.bf16.msra.mxu0 %v1034
    %1580 = vmatpush.bf16.msra.mxu0 %v1030
    %1581 = vmatmul.bf16.gmra.mxu0 %v98
    %v1582 = vpop.f32.mrf.mxu0
    %v1583 = vadd.f32 %v1569, %v1582
    %v1584 = vpop.f32.mrf.mxu0
    %v1585 = vadd.f32 %v1571, %v1584
    %1586 = vdwg.mxu0
    %v1587 = vmul.f32 %v1331, %v1331
    %v1588 = vmul.f32 %v1415, %v1415
    %v1589 = vmul.f32 %v1499, %v1499
    %v1590 = vmul.f32 %v1583, %v1583
    %v1591 = vmul.f32 %v1333, %v1333
    %v1592 = vmul.f32 %v1417, %v1417
    %v1593 = vmul.f32 %v1501, %v1501
    %v1594 = vmul.f32 %v1585, %v1585
    %v1595 = vadd.f32 %v1587, %v1588
    %v1596 = vadd.f32 %v1595, %v1589
    %v1597 = vadd.f32 %v1596, %v1590
    %1598 = vadd.xlane.f32.xlu0 %v1597
    %v1599 = vpop.xlane.xlu0 %1598
    %v1600 = vadd.f32 %v1591, %v1592
    %v1601 = vadd.f32 %v1600, %v1593
    %v1602 = vadd.f32 %v1601, %v1594
    %1603 = vadd.xlane.f32.xlu0 %v1602
    %v1604 = vpop.xlane.xlu0 %1603
    %v1605 = vadd.f32 %v1599, 1e-12
    %v1606 = vadd.f32 %v1604, 1e-12
    %v1607 = vrsqrt.pop %v1605
    %v1608 = vmul.f32 %v1607, %v1605
    %v1609 = vmul.f32 %v1608, %v1607
    %v1610 = vmul.f32 0.5, %v1609
    %v1611 = vsub.f32 1.5, %v1610
    %v1612 = vmul.f32 %v1607, %v1611
    %vm1613 = vweird.f32 %v1605
    %vm1614 = vweird.f32 %v1607
    %vm1615 = vmor %vm1613, %vm1614
    %v1616 = vsel %vm1615, %v1607, %v1612
    %v1617 = vrsqrt.pop %v1606
    %v1618 = vmul.f32 %v1617, %v1606
    %v1619 = vmul.f32 %v1618, %v1617
    %v1620 = vmul.f32 0.5, %v1619
    %v1621 = vsub.f32 1.5, %v1620
    %v1622 = vmul.f32 %v1617, %v1621
    %vm1623 = vweird.f32 %v1606
    %vm1624 = vweird.f32 %v1617
    %vm1625 = vmor %vm1623, %vm1624
    %v1626 = vsel %vm1625, %v1617, %v1622
    %v1627 = vmul.f32 %v1331, %v1616
    %v1628 = vmul.f32 %v1415, %v1616
    %v1629 = vmul.f32 %v1499, %v1616
    %v1630 = vmul.f32 %v1583, %v1616
    %v1631 = vmul.f32 %v1333, %v1626
    %v1632 = vmul.f32 %v1417, %v1626
    %v1633 = vmul.f32 %v1501, %v1626
    %v1634 = vmul.f32 %v1585, %v1626
    %v1635 = vpack.c.bf16 %v1631, %v1627
    %v1636 = vpack.c.bf16 %v1632, %v1628
    %v1637 = vpack.c.bf16 %v1633, %v1629
    %v1638 = vpack.c.bf16 %v1634, %v1630
    %v1639 = vld [vmem:[#allocation7] sm:$0xff]
    %v1640 = vld [vmem:[#allocation7 + $0x8] sm:$0xff]
    %v1641 = vld [vmem:[#allocation7 + $0x10] sm:$0xff]
    %v1642 = vld [vmem:[#allocation7 + $0x18] sm:$0xff]
    %v1643 = vld [vmem:[#allocation7 + $0x20] sm:$0xff]
    %v1644 = vld [vmem:[#allocation7 + $0x28] sm:$0xff]
    %v1645 = vld [vmem:[#allocation7 + $0x30] sm:$0xff]
    %v1646 = vld [vmem:[#allocation7 + $0x38] sm:$0xff]
    %v1647 = vld [vmem:[#allocation7 + $0x40] sm:$0xff]
    %v1648 = vld [vmem:[#allocation7 + $0x48] sm:$0xff]
    %v1649 = vld [vmem:[#allocation7 + $0x50] sm:$0xff]
    %v1650 = vld [vmem:[#allocation7 + $0x58] sm:$0xff]
    %v1651 = vld [vmem:[#allocation7 + $0x60] sm:$0xff]
    %v1652 = vld [vmem:[#allocation7 + $0x68] sm:$0xff]
    %v1653 = vld [vmem:[#allocation7 + $0x70] sm:$0xff]
    %v1654 = vld [vmem:[#allocation7 + $0x78] sm:$0xff]
    %v1655 = vld [vmem:[#allocation7 + $0x80] sm:$0xff]
    %v1656 = vld [vmem:[#allocation7 + $0x88] sm:$0xff]
    %v1657 = vld [vmem:[#allocation7 + $0x90] sm:$0xff]
    %v1658 = vld [vmem:[#allocation7 + $0x98] sm:$0xff]
    %v1659 = vld [vmem:[#allocation7 + $0xa0] sm:$0xff]
    %v1660 = vld [vmem:[#allocation7 + $0xa8] sm:$0xff]
    %v1661 = vld [vmem:[#allocation7 + $0xb0] sm:$0xff]
    %v1662 = vld [vmem:[#allocation7 + $0xb8] sm:$0xff]
    %v1663 = vld [vmem:[#allocation7 + $0xc0] sm:$0xff]
    %v1664 = vld [vmem:[#allocation7 + $0xc8] sm:$0xff]
    %v1665 = vld [vmem:[#allocation7 + $0xd0] sm:$0xff]
    %v1666 = vld [vmem:[#allocation7 + $0xd8] sm:$0xff]
    %v1667 = vld [vmem:[#allocation7 + $0xe0] sm:$0xff]
    %v1668 = vld [vmem:[#allocation7 + $0xe8] sm:$0xff]
    %v1669 = vld [vmem:[#allocation7 + $0xf0] sm:$0xff]
    %v1670 = vld [vmem:[#allocation7 + $0xf8] sm:$0xff]
    %v1671 = vld [vmem:[#allocation7 + $0x100] sm:$0xff]
    %v1672 = vld [vmem:[#allocation7 + $0x108] sm:$0xff]
    %v1673 = vld [vmem:[#allocation7 + $0x110] sm:$0xff]
    %v1674 = vld [vmem:[#allocation7 + $0x118] sm:$0xff]
    %v1675 = vld [vmem:[#allocation7 + $0x120] sm:$0xff]
    %v1676 = vld [vmem:[#allocation7 + $0x128] sm:$0xff]
    %v1677 = vld [vmem:[#allocation7 + $0x130] sm:$0xff]
    %v1678 = vld [vmem:[#allocation7 + $0x138] sm:$0xff]
    %v1679 = vld [vmem:[#allocation7 + $0x140] sm:$0xff]
    %v1680 = vld [vmem:[#allocation7 + $0x148] sm:$0xff]
    %v1681 = vld [vmem:[#allocation7 + $0x150] sm:$0xff]
    %v1682 = vld [vmem:[#allocation7 + $0x158] sm:$0xff]
    %v1683 = vld [vmem:[#allocation7 + $0x160] sm:$0xff]
    %v1684 = vld [vmem:[#allocation7 + $0x168] sm:$0xff]
    %v1685 = vld [vmem:[#allocation7 + $0x170] sm:$0xff]
    %v1686 = vld [vmem:[#allocation7 + $0x178] sm:$0xff]
    %v1687 = vld [vmem:[#allocation7 + $0x180] sm:$0xff]
    %v1688 = vld [vmem:[#allocation7 + $0x188] sm:$0xff]
    %v1689 = vld [vmem:[#allocation7 + $0x190] sm:$0xff]
    %v1690 = vld [vmem:[#allocation7 + $0x198] sm:$0xff]
    %v1691 = vld [vmem:[#allocation7 + $0x1a0] sm:$0xff]
    %v1692 = vld [vmem:[#allocation7 + $0x1a8] sm:$0xff]
    %v1693 = vld [vmem:[#allocation7 + $0x1b0] sm:$0xff]
    %v1694 = vld [vmem:[#allocation7 + $0x1b8] sm:$0xff]
    %v1695 = vld [vmem:[#allocation7 + $0x1c0] sm:$0xff]
    %v1696 = vld [vmem:[#allocation7 + $0x1c8] sm:$0xff]
    %v1697 = vld [vmem:[#allocation7 + $0x1d0] sm:$0xff]
    %v1698 = vld [vmem:[#allocation7 + $0x1d8] sm:$0xff]
    %v1699 = vld [vmem:[#allocation7 + $0x1e0] sm:$0xff]
    %v1700 = vld [vmem:[#allocation7 + $0x1e8] sm:$0xff]
    %v1701 = vld [vmem:[#allocation7 + $0x1f0] sm:$0xff]
    %v1702 = vld [vmem:[#allocation7 + $0x1f8] sm:$0xff]
    %v1767 = vunpack.c.l.b16 %v1639
    %v1768 = vunpack.c.h.b16 %v1639
    %v1769 = vunpack.c.l.b16 %v1640
    %v1770 = vunpack.c.h.b16 %v1640
    %v1771 = vunpack.c.l.b16 %v1641
    %v1772 = vunpack.c.h.b16 %v1641
    %v1773 = vunpack.c.l.b16 %v1642
    %v1774 = vunpack.c.h.b16 %v1642
    %v1775 = vunpack.c.l.b16 %v1643
    %v1776 = vunpack.c.h.b16 %v1643
    %v1777 = vunpack.c.l.b16 %v1644
    %v1778 = vunpack.c.h.b16 %v1644
    %v1779 = vunpack.c.l.b16 %v1645
    %v1780 = vunpack.c.h.b16 %v1645
    %v1781 = vunpack.c.l.b16 %v1646
    %v1782 = vunpack.c.h.b16 %v1646
    %v1783 = vunpack.c.l.b16 %v1647
    %v1784 = vunpack.c.h.b16 %v1647
    %v1785 = vunpack.c.l.b16 %v1648
    %v1786 = vunpack.c.h.b16 %v1648
    %v1787 = vunpack.c.l.b16 %v1649
    %v1788 = vunpack.c.h.b16 %v1649
    %v1789 = vunpack.c.l.b16 %v1650
    %v1790 = vunpack.c.h.b16 %v1650
    %v1791 = vunpack.c.l.b16 %v1651
    %v1792 = vunpack.c.h.b16 %v1651
    %v1793 = vunpack.c.l.b16 %v1652
    %v1794 = vunpack.c.h.b16 %v1652
    %v1795 = vunpack.c.l.b16 %v1653
    %v1796 = vunpack.c.h.b16 %v1653
    %v1797 = vunpack.c.l.b16 %v1654
    %v1798 = vunpack.c.h.b16 %v1654
    %v1799 = vunpack.c.l.b16 %v1655
    %v1800 = vunpack.c.h.b16 %v1655
    %v1801 = vunpack.c.l.b16 %v1656
    %v1802 = vunpack.c.h.b16 %v1656
    %v1803 = vunpack.c.l.b16 %v1657
    %v1804 = vunpack.c.h.b16 %v1657
    %v1805 = vunpack.c.l.b16 %v1658
    %v1806 = vunpack.c.h.b16 %v1658
    %v1807 = vunpack.c.l.b16 %v1659
    %v1808 = vunpack.c.h.b16 %v1659
    %v1809 = vunpack.c.l.b16 %v1660
    %v1810 = vunpack.c.h.b16 %v1660
    %v1811 = vunpack.c.l.b16 %v1661
    %v1812 = vunpack.c.h.b16 %v1661
    %v1813 = vunpack.c.l.b16 %v1662
    %v1814 = vunpack.c.h.b16 %v1662
    %v1815 = vunpack.c.l.b16 %v1663
    %v1816 = vunpack.c.h.b16 %v1663
    %v1817 = vunpack.c.l.b16 %v1664
    %v1818 = vunpack.c.h.b16 %v1664
    %v1819 = vunpack.c.l.b16 %v1665
    %v1820 = vunpack.c.h.b16 %v1665
    %v1821 = vunpack.c.l.b16 %v1666
    %v1822 = vunpack.c.h.b16 %v1666
    %v1823 = vunpack.c.l.b16 %v1667
    %v1824 = vunpack.c.h.b16 %v1667
    %v1825 = vunpack.c.l.b16 %v1668
    %v1826 = vunpack.c.h.b16 %v1668
    %v1827 = vunpack.c.l.b16 %v1669
    %v1828 = vunpack.c.h.b16 %v1669
    %v1829 = vunpack.c.l.b16 %v1670
    %v1830 = vunpack.c.h.b16 %v1670
    %v1831 = vunpack.c.l.b16 %v1671
    %v1832 = vunpack.c.h.b16 %v1671
    %v1833 = vunpack.c.l.b16 %v1672
    %v1834 = vunpack.c.h.b16 %v1672
    %v1835 = vunpack.c.l.b16 %v1673
    %v1836 = vunpack.c.h.b16 %v1673
    %v1837 = vunpack.c.l.b16 %v1674
    %v1838 = vunpack.c.h.b16 %v1674
    %v1839 = vunpack.c.l.b16 %v1675
    %v1840 = vunpack.c.h.b16 %v1675
    %v1841 = vunpack.c.l.b16 %v1676
    %v1842 = vunpack.c.h.b16 %v1676
    %v1843 = vunpack.c.l.b16 %v1677
    %v1844 = vunpack.c.h.b16 %v1677
    %v1845 = vunpack.c.l.b16 %v1678
    %v1846 = vunpack.c.h.b16 %v1678
    %v1847 = vunpack.c.l.b16 %v1679
    %v1848 = vunpack.c.h.b16 %v1679
    %v1849 = vunpack.c.l.b16 %v1680
    %v1850 = vunpack.c.h.b16 %v1680
    %v1851 = vunpack.c.l.b16 %v1681
    %v1852 = vunpack.c.h.b16 %v1681
    %v1853 = vunpack.c.l.b16 %v1682
    %v1854 = vunpack.c.h.b16 %v1682
    %v1855 = vunpack.c.l.b16 %v1683
    %v1856 = vunpack.c.h.b16 %v1683
    %v1857 = vunpack.c.l.b16 %v1684
    %v1858 = vunpack.c.h.b16 %v1684
    %v1859 = vunpack.c.l.b16 %v1685
    %v1860 = vunpack.c.h.b16 %v1685
    %v1861 = vunpack.c.l.b16 %v1686
    %v1862 = vunpack.c.h.b16 %v1686
    %v1863 = vunpack.c.l.b16 %v1687
    %v1864 = vunpack.c.h.b16 %v1687
    %v1865 = vunpack.c.l.b16 %v1688
    %v1866 = vunpack.c.h.b16 %v1688
    %v1867 = vunpack.c.l.b16 %v1689
    %v1868 = vunpack.c.h.b16 %v1689
    %v1869 = vunpack.c.l.b16 %v1690
    %v1870 = vunpack.c.h.b16 %v1690
    %v1871 = vunpack.c.l.b16 %v1691
    %v1872 = vunpack.c.h.b16 %v1691
    %v1873 = vunpack.c.l.b16 %v1692
    %v1874 = vunpack.c.h.b16 %v1692
    %v1875 = vunpack.c.l.b16 %v1693
    %v1876 = vunpack.c.h.b16 %v1693
    %v1877 = vunpack.c.l.b16 %v1694
    %v1878 = vunpack.c.h.b16 %v1694
    %v1879 = vunpack.c.l.b16 %v1695
    %v1880 = vunpack.c.h.b16 %v1695
    %v1881 = vunpack.c.l.b16 %v1696
    %v1882 = vunpack.c.h.b16 %v1696
    %v1883 = vunpack.c.l.b16 %v1697
    %v1884 = vunpack.c.h.b16 %v1697
    %v1885 = vunpack.c.l.b16 %v1698
    %v1886 = vunpack.c.h.b16 %v1698
    %v1887 = vunpack.c.l.b16 %v1699
    %v1888 = vunpack.c.h.b16 %v1699
    %v1889 = vunpack.c.l.b16 %v1700
    %v1890 = vunpack.c.h.b16 %v1700
    %v1891 = vunpack.c.l.b16 %v1701
    %v1892 = vunpack.c.h.b16 %v1701
    %v1893 = vunpack.c.l.b16 %v1702
    %v1894 = vunpack.c.h.b16 %v1702
    %v1895 = vpack.c.b16 %v1769, %v1767
    %v1896 = vpack.c.b16 %v1770, %v1768
    %v1897 = vpack.c.b16 %v1773, %v1771
    %v1898 = vpack.c.b16 %v1774, %v1772
    %v1899 = vpack.c.b16 %v1777, %v1775
    %v1900 = vpack.c.b16 %v1778, %v1776
    %v1901 = vpack.c.b16 %v1781, %v1779
    %v1902 = vpack.c.b16 %v1782, %v1780
    %v1903 = vpack.c.b16 %v1785, %v1783
    %v1904 = vpack.c.b16 %v1786, %v1784
    %v1905 = vpack.c.b16 %v1789, %v1787
    %v1906 = vpack.c.b16 %v1790, %v1788
    %v1907 = vpack.c.b16 %v1793, %v1791
    %v1908 = vpack.c.b16 %v1794, %v1792
    %v1909 = vpack.c.b16 %v1797, %v1795
    %v1910 = vpack.c.b16 %v1798, %v1796
    %v1911 = vpack.c.b16 %v1801, %v1799
    %v1912 = vpack.c.b16 %v1802, %v1800
    %v1913 = vpack.c.b16 %v1805, %v1803
    %v1914 = vpack.c.b16 %v1806, %v1804
    %v1915 = vpack.c.b16 %v1809, %v1807
    %v1916 = vpack.c.b16 %v1810, %v1808
    %v1917 = vpack.c.b16 %v1813, %v1811
    %v1918 = vpack.c.b16 %v1814, %v1812
    %v1919 = vpack.c.b16 %v1817, %v1815
    %v1920 = vpack.c.b16 %v1818, %v1816
    %v1921 = vpack.c.b16 %v1821, %v1819
    %v1922 = vpack.c.b16 %v1822, %v1820
    %v1923 = vpack.c.b16 %v1825, %v1823
    %v1924 = vpack.c.b16 %v1826, %v1824
    %v1925 = vpack.c.b16 %v1829, %v1827
    %v1926 = vpack.c.b16 %v1830, %v1828
    %v1927 = vpack.c.b16 %v1833, %v1831
    %v1928 = vpack.c.b16 %v1834, %v1832
    %v1929 = vpack.c.b16 %v1837, %v1835
    %v1930 = vpack.c.b16 %v1838, %v1836
    %v1931 = vpack.c.b16 %v1841, %v1839
    %v1932 = vpack.c.b16 %v1842, %v1840
    %v1933 = vpack.c.b16 %v1845, %v1843
    %v1934 = vpack.c.b16 %v1846, %v1844
    %v1935 = vpack.c.b16 %v1849, %v1847
    %v1936 = vpack.c.b16 %v1850, %v1848
    %v1937 = vpack.c.b16 %v1853, %v1851
    %v1938 = vpack.c.b16 %v1854, %v1852
    %v1939 = vpack.c.b16 %v1857, %v1855
    %v1940 = vpack.c.b16 %v1858, %v1856
    %v1941 = vpack.c.b16 %v1861, %v1859
    %v1942 = vpack.c.b16 %v1862, %v1860
    %v1943 = vpack.c.b16 %v1865, %v1863
    %v1944 = vpack.c.b16 %v1866, %v1864
    %v1945 = vpack.c.b16 %v1869, %v1867
    %v1946 = vpack.c.b16 %v1870, %v1868
    %v1947 = vpack.c.b16 %v1873, %v1871
    %v1948 = vpack.c.b16 %v1874, %v1872
    %v1949 = vpack.c.b16 %v1877, %v1875
    %v1950 = vpack.c.b16 %v1878, %v1876
    %v1951 = vpack.c.b16 %v1881, %v1879
    %v1952 = vpack.c.b16 %v1882, %v1880
    %v1953 = vpack.c.b16 %v1885, %v1883
    %v1954 = vpack.c.b16 %v1886, %v1884
    %v1955 = vpack.c.b16 %v1889, %v1887
    %v1956 = vpack.c.b16 %v1890, %v1888
    %v1957 = vpack.c.b16 %v1893, %v1891
    %v1958 = vpack.c.b16 %v1894, %v1892
    %2023 = vmatpush.bf16.msra.mxu0 %v1909
    %2024 = vmatpush.bf16.msra.mxu0 %v1907
    %2025 = vmatpush.bf16.msra.mxu0 %v1905
    %2026 = vmatpush.bf16.msra.mxu0 %v1903
    %2027 = vmatpush.bf16.msra.mxu0 %v1901
    %2028 = vmatpush.bf16.msra.mxu0 %v1899
    %2029 = vmatpush.bf16.msra.mxu0 %v1897
    %2030 = vmatpush.bf16.msra.mxu0 %v1895
    %2031 = vmatmul.bf16.gmra.mxu0 %v1635
    %v2032 = vpop.f32.mrf.mxu0
    %v2033 = vadd.f32 0.0, %v2032
    %v2034 = vpop.f32.mrf.mxu0
    %v2035 = vadd.f32 0.0, %v2034
    %2036 = vdwg.mxu0
    %2037 = vmatpush.bf16.msra.mxu0 %v1925
    %2038 = vmatpush.bf16.msra.mxu0 %v1923
    %2039 = vmatpush.bf16.msra.mxu0 %v1921
    %2040 = vmatpush.bf16.msra.mxu0 %v1919
    %2041 = vmatpush.bf16.msra.mxu0 %v1917
    %2042 = vmatpush.bf16.msra.mxu0 %v1915
    %2043 = vmatpush.bf16.msra.mxu0 %v1913
    %2044 = vmatpush.bf16.msra.mxu0 %v1911
    %2045 = vmatmul.bf16.gmra.mxu0 %v1636
    %v2046 = vpop.f32.mrf.mxu0
    %v2047 = vadd.f32 %v2033, %v2046
    %v2048 = vpop.f32.mrf.mxu0
    %v2049 = vadd.f32 %v2035, %v2048
    %2050 = vdwg.mxu0
    %2051 = vmatpush.bf16.msra.mxu0 %v1941
    %2052 = vmatpush.bf16.msra.mxu0 %v1939
    %2053 = vmatpush.bf16.msra.mxu0 %v1937
    %2054 = vmatpush.bf16.msra.mxu0 %v1935
    %2055 = vmatpush.bf16.msra.mxu0 %v1933
    %2056 = vmatpush.bf16.msra.mxu0 %v1931
    %2057 = vmatpush.bf16.msra.mxu0 %v1929
    %2058 = vmatpush.bf16.msra.mxu0 %v1927
    %2059 = vmatmul.bf16.gmra.mxu0 %v1637
    %v2060 = vpop.f32.mrf.mxu0
    %v2061 = vadd.f32 %v2047, %v2060
    %v2062 = vpop.f32.mrf.mxu0
    %v2063 = vadd.f32 %v2049, %v2062
    %2064 = vdwg.mxu0
    %2065 = vmatpush.bf16.msra.mxu0 %v1957
    %2066 = vmatpush.bf16.msra.mxu0 %v1955
    %2067 = vmatpush.bf16.msra.mxu0 %v1953
    %2068 = vmatpush.bf16.msra.mxu0 %v1951
    %2069 = vmatpush.bf16.msra.mxu0 %v1949
    %2070 = vmatpush.bf16.msra.mxu0 %v1947
    %2071 = vmatpush.bf16.msra.mxu0 %v1945
    %2072 = vmatpush.bf16.msra.mxu0 %v1943
    %2073 = vmatmul.bf16.gmra.mxu0 %v1638
    %v2074 = vpop.f32.mrf.mxu0
    %v2075 = vadd.f32 %v2061, %v2074
    %v2076 = vpop.f32.mrf.mxu0
    %v2077 = vadd.f32 %v2063, %v2076
    %2078 = vdwg.mxu0
    %2079 = vmatpush.bf16.msra.mxu0 %v1910
    %2080 = vmatpush.bf16.msra.mxu0 %v1908
    %2081 = vmatpush.bf16.msra.mxu0 %v1906
    %2082 = vmatpush.bf16.msra.mxu0 %v1904
    %2083 = vmatpush.bf16.msra.mxu0 %v1902
    %2084 = vmatpush.bf16.msra.mxu0 %v1900
    %2085 = vmatpush.bf16.msra.mxu0 %v1898
    %2086 = vmatpush.bf16.msra.mxu0 %v1896
    %2087 = vmatmul.bf16.gmra.mxu0 %v1635
    %v2088 = vpop.f32.mrf.mxu0
    %v2089 = vadd.f32 0.0, %v2088
    %v2090 = vpop.f32.mrf.mxu0
    %v2091 = vadd.f32 0.0, %v2090
    %2092 = vdwg.mxu0
    %2093 = vmatpush.bf16.msra.mxu0 %v1926
    %2094 = vmatpush.bf16.msra.mxu0 %v1924
    %2095 = vmatpush.bf16.msra.mxu0 %v1922
    %2096 = vmatpush.bf16.msra.mxu0 %v1920
    %2097 = vmatpush.bf16.msra.mxu0 %v1918
    %2098 = vmatpush.bf16.msra.mxu0 %v1916
    %2099 = vmatpush.bf16.msra.mxu0 %v1914
    %2100 = vmatpush.bf16.msra.mxu0 %v1912
    %2101 = vmatmul.bf16.gmra.mxu0 %v1636
    %v2102 = vpop.f32.mrf.mxu0
    %v2103 = vadd.f32 %v2089, %v2102
    %v2104 = vpop.f32.mrf.mxu0
    %v2105 = vadd.f32 %v2091, %v2104
    %2106 = vdwg.mxu0
    %2107 = vmatpush.bf16.msra.mxu0 %v1942
    %2108 = vmatpush.bf16.msra.mxu0 %v1940
    %2109 = vmatpush.bf16.msra.mxu0 %v1938
    %2110 = vmatpush.bf16.msra.mxu0 %v1936
    %2111 = vmatpush.bf16.msra.mxu0 %v1934
    %2112 = vmatpush.bf16.msra.mxu0 %v1932
    %2113 = vmatpush.bf16.msra.mxu0 %v1930
    %2114 = vmatpush.bf16.msra.mxu0 %v1928
    %2115 = vmatmul.bf16.gmra.mxu0 %v1637
    %v2116 = vpop.f32.mrf.mxu0
    %v2117 = vadd.f32 %v2103, %v2116
    %v2118 = vpop.f32.mrf.mxu0
    %v2119 = vadd.f32 %v2105, %v2118
    %2120 = vdwg.mxu0
    %2121 = vmatpush.bf16.msra.mxu0 %v1958
    %2122 = vmatpush.bf16.msra.mxu0 %v1956
    %2123 = vmatpush.bf16.msra.mxu0 %v1954
    %2124 = vmatpush.bf16.msra.mxu0 %v1952
    %2125 = vmatpush.bf16.msra.mxu0 %v1950
    %2126 = vmatpush.bf16.msra.mxu0 %v1948
    %2127 = vmatpush.bf16.msra.mxu0 %v1946
    %2128 = vmatpush.bf16.msra.mxu0 %v1944
    %2129 = vmatmul.bf16.gmra.mxu0 %v1638
    %v2130 = vpop.f32.mrf.mxu0
    %v2131 = vadd.f32 %v2117, %v2130
    %v2132 = vpop.f32.mrf.mxu0
    %v2133 = vadd.f32 %v2119, %v2132
    %2134 = vdwg.mxu0
    %v2135 = vmax.f32 %v2075, 0.0
    %v2136 = vmax.f32 %v2131, 0.0
    %v2137 = vmax.f32 %v2077, 0.0
    %v2138 = vmax.f32 %v2133, 0.0
    %v2139 = vpack.c.bf16 %v2137, %v2135
    %v2140 = vpack.c.bf16 %v2138, %v2136
    %v2141 = vld [vmem:[#allocation8] sm:$0xf]
    %v2142 = vld [vmem:[#allocation8 + $0x4] sm:$0xf]
    %v2143 = vld [vmem:[#allocation8 + $0x8] sm:$0xf]
    %v2144 = vld [vmem:[#allocation8 + $0xc] sm:$0xf]
    %v2145 = vld [vmem:[#allocation8 + $0x10] sm:$0xf]
    %v2146 = vld [vmem:[#allocation8 + $0x14] sm:$0xf]
    %v2147 = vld [vmem:[#allocation8 + $0x18] sm:$0xf]
    %v2148 = vld [vmem:[#allocation8 + $0x1c] sm:$0xf]
    %v2149 = vld [vmem:[#allocation8 + $0x20] sm:$0xf]
    %v2150 = vld [vmem:[#allocation8 + $0x24] sm:$0xf]
    %v2151 = vld [vmem:[#allocation8 + $0x28] sm:$0xf]
    %v2152 = vld [vmem:[#allocation8 + $0x2c] sm:$0xf]
    %v2153 = vld [vmem:[#allocation8 + $0x30] sm:$0xf]
    %v2154 = vld [vmem:[#allocation8 + $0x34] sm:$0xf]
    %v2155 = vld [vmem:[#allocation8 + $0x38] sm:$0xf]
    %v2156 = vld [vmem:[#allocation8 + $0x3c] sm:$0xf]
    %v2157 = vld [vmem:[#allocation8 + $0x40] sm:$0xf]
    %v2158 = vld [vmem:[#allocation8 + $0x44] sm:$0xf]
    %v2159 = vld [vmem:[#allocation8 + $0x48] sm:$0xf]
    %v2160 = vld [vmem:[#allocation8 + $0x4c] sm:$0xf]
    %v2161 = vld [vmem:[#allocation8 + $0x50] sm:$0xf]
    %v2162 = vld [vmem:[#allocation8 + $0x54] sm:$0xf]
    %v2163 = vld [vmem:[#allocation8 + $0x58] sm:$0xf]
    %v2164 = vld [vmem:[#allocation8 + $0x5c] sm:$0xf]
    %v2165 = vld [vmem:[#allocation8 + $0x60] sm:$0xf]
    %v2166 = vld [vmem:[#allocation8 + $0x64] sm:$0xf]
    %v2167 = vld [vmem:[#allocation8 + $0x68] sm:$0xf]
    %v2168 = vld [vmem:[#allocation8 + $0x6c] sm:$0xf]
    %v2169 = vld [vmem:[#allocation8 + $0x70] sm:$0xf]
    %v2170 = vld [vmem:[#allocation8 + $0x74] sm:$0xf]
    %v2171 = vld [vmem:[#allocation8 + $0x78] sm:$0xf]
    %v2172 = vld [vmem:[#allocation8 + $0x7c] sm:$0xf]
    %v2205 = vunpack.c.l.b16 %v2141
    %v2206 = vunpack.c.l.b16 %v2142
    %v2207 = vunpack.c.l.b16 %v2143
    %v2208 = vunpack.c.l.b16 %v2144
    %v2209 = vunpack.c.l.b16 %v2145
    %v2210 = vunpack.c.l.b16 %v2146
    %v2211 = vunpack.c.l.b16 %v2147
    %v2212 = vunpack.c.l.b16 %v2148
    %v2213 = vunpack.c.l.b16 %v2149
    %v2214 = vunpack.c.l.b16 %v2150
    %v2215 = vunpack.c.l.b16 %v2151
    %v2216 = vunpack.c.l.b16 %v2152
    %v2217 = vunpack.c.l.b16 %v2153
    %v2218 = vunpack.c.l.b16 %v2154
    %v2219 = vunpack.c.l.b16 %v2155
    %v2220 = vunpack.c.l.b16 %v2156
    %v2221 = vunpack.c.l.b16 %v2157
    %v2222 = vunpack.c.l.b16 %v2158
    %v2223 = vunpack.c.l.b16 %v2159
    %v2224 = vunpack.c.l.b16 %v2160
    %v2225 = vunpack.c.l.b16 %v2161
    %v2226 = vunpack.c.l.b16 %v2162
    %v2227 = vunpack.c.l.b16 %v2163
    %v2228 = vunpack.c.l.b16 %v2164
    %v2229 = vunpack.c.l.b16 %v2165
    %v2230 = vunpack.c.l.b16 %v2166
    %v2231 = vunpack.c.l.b16 %v2167
    %v2232 = vunpack.c.l.b16 %v2168
    %v2233 = vunpack.c.l.b16 %v2169
    %v2234 = vunpack.c.l.b16 %v2170
    %v2235 = vunpack.c.l.b16 %v2171
    %v2236 = vunpack.c.l.b16 %v2172
    %v2237 = vpack.c.b16 %v2206, %v2205
    %v2238 = vpack.c.b16 %v2208, %v2207
    %v2239 = vpack.c.b16 %v2210, %v2209
    %v2240 = vpack.c.b16 %v2212, %v2211
    %v2241 = vpack.c.b16 %v2214, %v2213
    %v2242 = vpack.c.b16 %v2216, %v2215
    %v2243 = vpack.c.b16 %v2218, %v2217
    %v2244 = vpack.c.b16 %v2220, %v2219
    %v2245 = vpack.c.b16 %v2222, %v2221
    %v2246 = vpack.c.b16 %v2224, %v2223
    %v2247 = vpack.c.b16 %v2226, %v2225
    %v2248 = vpack.c.b16 %v2228, %v2227
    %v2249 = vpack.c.b16 %v2230, %v2229
    %v2250 = vpack.c.b16 %v2232, %v2231
    %v2251 = vpack.c.b16 %v2234, %v2233
    %v2252 = vpack.c.b16 %v2236, %v2235
    %2269 = vmatpush.bf16.msra.mxu0 %v2244
    %2270 = vmatpush.bf16.msra.mxu0 %v2243
    %2271 = vmatpush.bf16.msra.mxu0 %v2242
    %2272 = vmatpush.bf16.msra.mxu0 %v2241
    %2273 = vmatpush.bf16.msra.mxu0 %v2240
    %2274 = vmatpush.bf16.msra.mxu0 %v2239
    %2275 = vmatpush.bf16.msra.mxu0 %v2238
    %2276 = vmatpush.bf16.msra.mxu0 %v2237
    %2277 = vmatmul.bf16.gmra.mxu0 %v2139
    %v2278 = vpop.f32.mrf.mxu0
    %v2279 = vadd.f32 0.0, %v2278
    %v2280 = vpop.f32.mrf.mxu0
    %v2281 = vadd.f32 0.0, %v2280
    %2282 = vdwg.mxu0
    %2283 = vmatpush.bf16.msra.mxu0 %v2252
    %2284 = vmatpush.bf16.msra.mxu0 %v2251
    %2285 = vmatpush.bf16.msra.mxu0 %v2250
    %2286 = vmatpush.bf16.msra.mxu0 %v2249
    %2287 = vmatpush.bf16.msra.mxu0 %v2248
    %2288 = vmatpush.bf16.msra.mxu0 %v2247
    %2289 = vmatpush.bf16.msra.mxu0 %v2246
    %2290 = vmatpush.bf16.msra.mxu0 %v2245
    %2291 = vmatmul.bf16.gmra.mxu0 %v2140
    %v2292 = vpop.f32.mrf.mxu0
    %v2293 = vadd.f32 %v2279, %v2292
    %v2294 = vpop.f32.mrf.mxu0
    %v2295 = vadd.f32 %v2281, %v2294
    %2296 = vdwg.mxu0
    %2297 = vst [vmem:[#allocation10] sm:$0xff] %v2293
    %2298 = vst [vmem:[#allocation10 + $0x8] sm:$0xff] %v2295
    // Predicated region
    $region34: #{tpu_custom_call.1} parent=1 // pred_check
      _
    $region35: #{tpu_custom_call.1} parent=1 // pred_check_branch
      %2300 = sbr.rel (0) target = $region37
    $region36: #{tpu_custom_call.1} parent=1 // pred_region
      %2302 = vsyncadd [#allocation4], 0
      %s2303 = sshll.u32 [#allocation10], 4
      %s2304 = int_to_ptr.vmem [resolvable:$true] %s2303
      %s2305 = sshll.u32 %s4, 4
      %s2306 = int_to_ptr.hbm [resolvable:$true] %s2305
      %2311 = dma.vmem_to_hbm [thread:$0]  %s2304, 256, %s2306, [#allocation4], 128, 128, 8
    $region37: #{tpu_custom_call.1} parent=1 // pred_fallthru
      _
    // Predicated region
    $region38: #{tpu_custom_call.1} parent=1 // pred_check
      _
    $region39: #{tpu_custom_call.1} parent=1 // pred_check_branch
      %2313 = sbr.rel (0) target = $region41
    $region40: #{tpu_custom_call.1} parent=1 // pred_region
      %2315 = dma.done [#allocation4], 256
    $region41: #{tpu_custom_call.1} parent=1 // pred_fallthru
      _
    %2316 = vsyncpa [#allocation3], 1
    %2317 = vsyncpa [#allocation6], 1
    %2318 = vsyncpa [#allocation9], 1
    %2319 = vsyncpa [#allocation4], 1

</llo_original>
